<compile_context>
chip_gen: v7x
topology: tpu7x:2x2x1
jax: 0.10.0
libtpu: 0.0.40
codegen_flags: <defaults>
</compile_context>

<pallas_src>
import jax
import jax.numpy as jnp
import numpy as np
from jax import lax
from jax.experimental import pallas as pl
from jax.experimental.pallas import tpu as pltpu


def _leaky_relu(x, slope=0.01):
    return jnp.where(x > 0, x, slope * x)


# ---------------------------------------------------------------------------
# Pallas kernel: one grid step = `blk_n` samples, all parts on the lane axis.
# ---------------------------------------------------------------------------
def tfa_kernel(x_ref, wa_ref, w1b_ref, w2b_ref, out_ref):
    """Shapes (L = c*p, H = hidden*p):
         x_ref:   [blk_n, c, s, p]   raw input block (native layout)
         wa_ref:  [3, L, 2H]         fused first-layer conv weights (both branches)
         w1b_ref: [H, L]             branch-1 second layer (1x1 conv)
         w2b_ref: [3, H, L]          branch-2 second layer (k=3 conv)
         out_ref: [1, blk_n, L]      temporal-max features, lane = channel*p + part
    """
    blk_n, c, s, p = x_ref.shape
    M = blk_n * s
    L = wa_ref.shape[1]
    H = wa_ref.shape[-1] // 2
    f32 = jnp.float32

    def mm(a, b):  # [M, K] x [K, N] on the MXU with f32 accumulation.
        return lax.dot_general(
            a, b, dimension_numbers=(((1,), (0,)), ((), ())),
            preferred_element_type=f32)

    def sigmoid(z):
        return 1.0 / (1.0 + jnp.exp(-z))

    # Lane-pack the parts: [blk_n, c, s, p] -> [M, L], lane = channel*p + part.
    # (This folds the former wrapper-side transpose into the kernel.)
    x = jnp.concatenate(
        [x_ref[:, ci].reshape(M, p) for ci in range(c)], axis=-1).astype(f32)

    # Time-shifted copies via sublane rolls + boundary masks.  Rows are the
    # (sample, t) pairs merged on the sublane axis; any row that would wrap
    # across a sample boundary is exactly a row the mask overwrites.
    def rolled_valid(arr, d):
        rolled = pltpu.roll(arr, shift=(-d) % arr.shape[0], axis=0)
        t = lax.broadcasted_iota(
            jnp.int32, (blk_n, s, arr.shape[1]), 1).reshape(arr.shape)
        valid = (t < s - d) if d > 0 else (t >= -d)
        return rolled, valid

    def shift_zero(arr, d):                      # zero pad (convs / avg pools)
        rolled, valid = rolled_valid(arr, d)
        return jnp.where(valid, rolled, 0.0)

    def shift_zero_ninf(arr, d):                 # zero- and (-inf)-padded pair
        rolled, valid = rolled_valid(arr, d)
        return jnp.where(valid, rolled, 0.0), jnp.where(valid, rolled, -jnp.inf)

    xm1z, xm1i = shift_zero_ninf(x, -1)
    xp1z, xp1i = shift_zero_ninf(x, +1)
    xm2z, xm2i = shift_zero_ninf(x, -2)
    xp2z, xp2i = shift_zero_ninf(x, +2)

    # AvgPool uses count_include_pad=True (the PyTorch AvgPool1d default);
    # MaxPool pads with -inf.  The d=0 term keeps every max finite.
    pool3 = (xm1z + x + xp1z) * (1.0 / 3.0) \
        + jnp.maximum(jnp.maximum(xm1i, x), xp1i)
    pool5 = (xm2z + xm1z + x + xp1z + xp2z) * 0.2 \
        + jnp.maximum(jnp.maximum(jnp.maximum(xm2i, xm1i),
                                  jnp.maximum(x, xp1i)), xp2i)

    # First conv layer of BOTH branches fused into one [L, 2H] matmul per tap.
    h12 = mm(xm1z, wa_ref[0]) + mm(x, wa_ref[1]) + mm(xp1z, wa_ref[2])
    h12 = _leaky_relu(h12)                               # LeakyReLU(0.01)
    h1 = h12[:, :H]                                      # 3x1-branch hidden
    h2 = h12[:, H:]                                      # 3x3-branch hidden

    # Branch 1: 1x1 conv -> sigmoid gate.
    scores3x1 = sigmoid(mm(h1, w1b_ref[...]))            # [M, L]

    # Branch 2: k=3 conv on the hidden features -> sigmoid gate.
    h2m1 = shift_zero(h2, -1)
    h2p1 = shift_zero(h2, +1)
    scores3x3 = sigmoid(mm(h2m1, w2b_ref[0]) + mm(h2, w2b_ref[1])
                        + mm(h2p1, w2b_ref[2]))          # [M, L]

    feat = pool3 * scores3x1 + pool5 * scores3x3          # [M, L]
    out = jnp.max(feat.reshape(blk_n, s, L), axis=1)      # temporal max pooling
    out_ref[...] = out.reshape(out_ref.shape)


# ---------------------------------------------------------------------------
# One-time host-side weight packing (kept out of the per-call path).
# ---------------------------------------------------------------------------
def pack_tfa_weights(w1a, w1b, w2a, w2b):
    """Pack per-part conv weights into lane-blocked matrices.

    Per-part layouts (part j, tap k, in-channel ci, hidden hc, out-channel co):
      w1a, w2a: [p, 3, c, h]   Conv1d(c -> h, k=3, pad=1), no bias
      w1b:      [p, h, c]      Conv1d(h -> c, k=1),        no bias
      w2b:      [p, 3, h, c]   Conv1d(h -> c, k=3, pad=1), no bias
    Returns block-diagonal matrices with lane = channel*p + part:
      wa_pk:  [3, L, 2H]  (cols [0:H) -> 3x1-branch hidden, [H:2H) -> 3x3-branch)
      w1b_pk: [H, L]
      w2b_pk: [3, H, L]
    """
    w1a = np.asarray(w1a, np.float32)
    w1b = np.asarray(w1b, np.float32)
    w2a = np.asarray(w2a, np.float32)
    w2b = np.asarray(w2b, np.float32)
    p, k, c, h = w1a.shape
    L, H = c * p, h * p
    wa_pk = np.zeros((k, L, 2 * H), np.float32)
    w1b_pk = np.zeros((H, L), np.float32)
    w2b_pk = np.zeros((k, H, L), np.float32)
    for j in range(p):
        for ci in range(c):
            row = ci * p + j
            for hc in range(h):
                wa_pk[:, row, hc * p + j] = w1a[j, :, ci, hc]
                wa_pk[:, row, H + hc * p + j] = w2a[j, :, ci, hc]
        for hc in range(h):
            row = hc * p + j
            for co in range(c):
                w1b_pk[row, co * p + j] = w1b[j, hc, co]
                w2b_pk[:, row, co * p + j] = w2b[j, :, hc, co]
    return jnp.asarray(wa_pk), jnp.asarray(w1b_pk), jnp.asarray(w2b_pk)


def _tensorcores_per_chip():
    try:
        kind = jax.devices()[0].device_kind.lower()
    except Exception:
        return 1
    # v7x exposes 2 TensorCores per chip; v5e/v6e have 1.
    return 2 if ("v7" in kind or "7x" in kind) else 1


# ---------------------------------------------------------------------------
# Wrapper: all layout work lives inside the kernel; only free reshapes here.
# ---------------------------------------------------------------------------
def temporal_feature_aggregator(x, wa_pk, w1b_pk, w2b_pk):
    """TemporalFeatureAggregator forward: x [n, c, s, p] -> [n, c, p].

    Weights must be pre-packed once with `pack_tfa_weights`.
    """
    n, c, s, p = x.shape
    L = c * p
    # Single collapsed step on 1-TC chips (v5e/v6e); split the batch across
    # the two TensorCores on v7x (weights keep a constant index map).
    grid_n = n if (_tensorcores_per_chip() > 1 and n > 1) else 1
    blk_n = n // grid_n

    out = pl.pallas_call(
        tfa_kernel,
        out_shape=jax.ShapeDtypeStruct((grid_n, blk_n, L), jnp.float32),
        grid_spec=pltpu.PrefetchScalarGridSpec(
            num_scalar_prefetch=0,
            grid=(grid_n,),
            in_specs=[
                pl.BlockSpec((blk_n, c, s, p), lambda i: (i, 0, 0, 0)),
                pl.BlockSpec(wa_pk.shape, lambda i: (0, 0, 0)),
                pl.BlockSpec(w1b_pk.shape, lambda i: (0, 0)),
                pl.BlockSpec(w2b_pk.shape, lambda i: (0, 0, 0)),
            ],
            out_specs=pl.BlockSpec((1, blk_n, L), lambda i: (i, 0, 0)),
        ),
        compiler_params=pltpu.CompilerParams(
            dimension_semantics=("parallel",)),
    )(x.astype(jnp.float32), wa_pk, w1b_pk, w2b_pk)

    # Lane index is channel*p + part, so this reshape is a pure metadata op.
    return out.reshape(n, c, p)


# ---------------------------------------------------------------------------
# Pure-JAX reference (per-part math, vmapped) for the correctness check.
# ---------------------------------------------------------------------------
_REF_PREC = lax.Precision.HIGHEST   # keep the reference at full f32 accuracy


def _dot_ref(a, b):
    return lax.dot_general(a, b, dimension_numbers=(((2,), (0,)), ((), ())),
                           precision=_REF_PREC,
                           preferred_element_type=jnp.float32)


def _pad_time(x, pad, value):
    n_, _, c_ = x.shape
    padv = jnp.full((n_, pad, c_), value, x.dtype)
    return jnp.concatenate([padv, x, padv], axis=1)


def _conv1d_ref(x, w, pad):
    # x: [n, s, cin]; w: [k, cin, cout]; zero padded, stride 1.
    s_ = x.shape[1]
    xp = _pad_time(x, pad, 0.0)
    out = _dot_ref(xp[:, 0:s_, :], w[0])
    for t in range(1, w.shape[0]):
        out = out + _dot_ref(xp[:, t:t + s_, :], w[t])
    return out


def _avg_pool_ref(x, win, pad):
    s_ = x.shape[1]
    xp = _pad_time(x, pad, 0.0)
    acc = xp[:, 0:s_, :]
    for t in range(1, win):
        acc = acc + xp[:, t:t + s_, :]
    return acc * (1.0 / float(win))


def _max_pool_ref(x, win, pad):
    s_ = x.shape[1]
    xp = _pad_time(x, pad, -jnp.inf)
    acc = xp[:, 0:s_, :]
    for t in range(1, win):
        acc = jnp.maximum(acc, xp[:, t:t + s_, :])
    return acc


def _part_forward_ref(x, w1a, w1b, w2a, w2b):
    h1 = _leaky_relu(_conv1d_ref(x, w1a, pad=1))
    logits3x1 = lax.dot_general(h1, w1b,
                                dimension_numbers=(((2,), (0,)), ((), ())),
                                precision=_REF_PREC,
                                preferred_element_type=jnp.float32)
    feat3x1 = (_avg_pool_ref(x, 3, 1) + _max_pool_ref(x, 3, 1)) \
        * jax.nn.sigmoid(logits3x1)
    h2 = _leaky_relu(_conv1d_ref(x, w2a, pad=1))
    logits3x3 = _conv1d_ref(h2, w2b, pad=1)
    feat3x3 = (_avg_pool_ref(x, 5, 2) + _max_pool_ref(x, 5, 2)) \
        * jax.nn.sigmoid(logits3x3)
    return jnp.max(feat3x1 + feat3x3, axis=1)           # [n, c]


def reference_forward(x_ncsp, w1a, w1b, w2a, w2b):
    x_pnsc = jnp.transpose(x_ncsp, (3, 0, 2, 1)).astype(jnp.float32)
    out_pnc = jax.vmap(_part_forward_ref)(x_pnsc, w1a, w1b, w2a, w2b)
    return jnp.transpose(out_pnc, (1, 2, 0))             # [n, c, p]


if __name__ == "__main__":
    # Shapes consistent with the module: in_channels=16, squeeze=4 (hidden=4),
    # parts_num=16.  Input x: [n, c, s, p].
    n, c, s, p = 2, 16, 8, 16
    hidden = c // 4

    key = jax.random.PRNGKey(0)
    kx, k1, k2, k3, k4 = jax.random.split(key, 5)
    x = jax.random.normal(kx, (n, c, s, p), dtype=jnp.float32)
    w1a = 0.1 * jax.random.normal(k1, (p, 3, c, hidden), dtype=jnp.float32)
    w1b = 0.1 * jax.random.normal(k2, (p, hidden, c), dtype=jnp.float32)
    w2a = 0.1 * jax.random.normal(k3, (p, 3, c, hidden), dtype=jnp.float32)
    w2b = 0.1 * jax.random.normal(k4, (p, 3, hidden, c), dtype=jnp.float32)

    # One-time host-side weight packing (kept out of the per-call path).
    wa_pk, w1b_pk, w2b_pk = pack_tfa_weights(w1a, w1b, w2a, w2b)

    run = jax.jit(temporal_feature_aggregator)
    out = jax.block_until_ready(run(x, wa_pk, w1b_pk, w2b_pk))
    ref = jax.block_until_ready(
        jax.jit(reference_forward)(x, w1a, w1b, w2a, w2b))

    assert out.shape == (n, c, p), out.shape
    max_err = float(jnp.max(jnp.abs(out - ref)))
    assert jnp.allclose(out, ref, rtol=1e-4, atol=1e-4), max_err
    print("KERNEL_OK")
</pallas_src>

<mosaic_0001>
module attributes {stable_mosaic.version = 11 : i64} {
  func.func @tfa_kernel(%arg0: i32, %arg1: memref<2x16x8x16xf32, #tpu.memory_space<vmem>>, %arg2: memref<3x256x128xf32, #tpu.memory_space<vmem>>, %arg3: memref<64x256xf32, #tpu.memory_space<vmem>>, %arg4: memref<3x64x256xf32, #tpu.memory_space<vmem>>, %arg5: memref<1x2x256xf32, #tpu.memory_space<vmem>>) attributes {dimension_semantics = [#tpu.dimension_semantics<parallel>], iteration_bounds = array<i64: 1>, scalar_prefetch = 0 : i64, scratch_operands = 0 : i64, tpu.core_type = #tpu.core_type<tc>, window_params = [{transform_indices = @transform_0, window_bounds = array<i64: 2, 16, 8, 16>}, {pipeline_mode = #tpu.pipeline_mode<synchronous>, transform_indices = @transform_1, window_bounds = array<i64: 3, 256, 128>}, {pipeline_mode = #tpu.pipeline_mode<synchronous>, transform_indices = @transform_2, window_bounds = array<i64: 64, 256>}, {pipeline_mode = #tpu.pipeline_mode<synchronous>, transform_indices = @transform_3, window_bounds = array<i64: 3, 64, 256>}, {transform_indices = @transform_4, window_bounds = array<i64: 1, 2, 256>}]} {
    %c0 = arith.constant 0 : index
    %c0_0 = arith.constant 0 : index
    %c0_1 = arith.constant 0 : index
    %c0_2 = arith.constant 0 : index
    %0 = vector.load %arg1[%c0, %c0_0, %c0_1, %c0_2] : memref<2x16x8x16xf32, #tpu.memory_space<vmem>>, vector<2x1x8x16xf32>
    %1 = vector.shape_cast %0 : vector<2x1x8x16xf32> to vector<2x8x16xf32>
    %2 = vector.shape_cast %1 : vector<2x8x16xf32> to vector<16x16xf32>
    %c0_3 = arith.constant 0 : index
    %c1 = arith.constant 1 : index
    %c0_4 = arith.constant 0 : index
    %c0_5 = arith.constant 0 : index
    %3 = vector.load %arg1[%c0_3, %c1, %c0_4, %c0_5] : memref<2x16x8x16xf32, #tpu.memory_space<vmem>>, vector<2x1x8x16xf32>
    %4 = vector.shape_cast %3 : vector<2x1x8x16xf32> to vector<2x8x16xf32>
    %5 = vector.shape_cast %4 : vector<2x8x16xf32> to vector<16x16xf32>
    %c0_6 = arith.constant 0 : index
    %c2 = arith.constant 2 : index
    %c0_7 = arith.constant 0 : index
    %c0_8 = arith.constant 0 : index
    %6 = vector.load %arg1[%c0_6, %c2, %c0_7, %c0_8] : memref<2x16x8x16xf32, #tpu.memory_space<vmem>>, vector<2x1x8x16xf32>
    %7 = vector.shape_cast %6 : vector<2x1x8x16xf32> to vector<2x8x16xf32>
    %8 = vector.shape_cast %7 : vector<2x8x16xf32> to vector<16x16xf32>
    %c0_9 = arith.constant 0 : index
    %c3 = arith.constant 3 : index
    %c0_10 = arith.constant 0 : index
    %c0_11 = arith.constant 0 : index
    %9 = vector.load %arg1[%c0_9, %c3, %c0_10, %c0_11] : memref<2x16x8x16xf32, #tpu.memory_space<vmem>>, vector<2x1x8x16xf32>
    %10 = vector.shape_cast %9 : vector<2x1x8x16xf32> to vector<2x8x16xf32>
    %11 = vector.shape_cast %10 : vector<2x8x16xf32> to vector<16x16xf32>
    %c0_12 = arith.constant 0 : index
    %c4 = arith.constant 4 : index
    %c0_13 = arith.constant 0 : index
    %c0_14 = arith.constant 0 : index
    %12 = vector.load %arg1[%c0_12, %c4, %c0_13, %c0_14] : memref<2x16x8x16xf32, #tpu.memory_space<vmem>>, vector<2x1x8x16xf32>
    %13 = vector.shape_cast %12 : vector<2x1x8x16xf32> to vector<2x8x16xf32>
    %14 = vector.shape_cast %13 : vector<2x8x16xf32> to vector<16x16xf32>
    %c0_15 = arith.constant 0 : index
    %c5 = arith.constant 5 : index
    %c0_16 = arith.constant 0 : index
    %c0_17 = arith.constant 0 : index
    %15 = vector.load %arg1[%c0_15, %c5, %c0_16, %c0_17] : memref<2x16x8x16xf32, #tpu.memory_space<vmem>>, vector<2x1x8x16xf32>
    %16 = vector.shape_cast %15 : vector<2x1x8x16xf32> to vector<2x8x16xf32>
    %17 = vector.shape_cast %16 : vector<2x8x16xf32> to vector<16x16xf32>
    %c0_18 = arith.constant 0 : index
    %c6 = arith.constant 6 : index
    %c0_19 = arith.constant 0 : index
    %c0_20 = arith.constant 0 : index
    %18 = vector.load %arg1[%c0_18, %c6, %c0_19, %c0_20] : memref<2x16x8x16xf32, #tpu.memory_space<vmem>>, vector<2x1x8x16xf32>
    %19 = vector.shape_cast %18 : vector<2x1x8x16xf32> to vector<2x8x16xf32>
    %20 = vector.shape_cast %19 : vector<2x8x16xf32> to vector<16x16xf32>
    %c0_21 = arith.constant 0 : index
    %c7 = arith.constant 7 : index
    %c0_22 = arith.constant 0 : index
    %c0_23 = arith.constant 0 : index
    %21 = vector.load %arg1[%c0_21, %c7, %c0_22, %c0_23] : memref<2x16x8x16xf32, #tpu.memory_space<vmem>>, vector<2x1x8x16xf32>
    %22 = vector.shape_cast %21 : vector<2x1x8x16xf32> to vector<2x8x16xf32>
    %23 = vector.shape_cast %22 : vector<2x8x16xf32> to vector<16x16xf32>
    %c0_24 = arith.constant 0 : index
    %c8 = arith.constant 8 : index
    %c0_25 = arith.constant 0 : index
    %c0_26 = arith.constant 0 : index
    %24 = vector.load %arg1[%c0_24, %c8, %c0_25, %c0_26] : memref<2x16x8x16xf32, #tpu.memory_space<vmem>>, vector<2x1x8x16xf32>
    %25 = vector.shape_cast %24 : vector<2x1x8x16xf32> to vector<2x8x16xf32>
    %26 = vector.shape_cast %25 : vector<2x8x16xf32> to vector<16x16xf32>
    %c0_27 = arith.constant 0 : index
    %c9 = arith.constant 9 : index
    %c0_28 = arith.constant 0 : index
    %c0_29 = arith.constant 0 : index
    %27 = vector.load %arg1[%c0_27, %c9, %c0_28, %c0_29] : memref<2x16x8x16xf32, #tpu.memory_space<vmem>>, vector<2x1x8x16xf32>
    %28 = vector.shape_cast %27 : vector<2x1x8x16xf32> to vector<2x8x16xf32>
    %29 = vector.shape_cast %28 : vector<2x8x16xf32> to vector<16x16xf32>
    %c0_30 = arith.constant 0 : index
    %c10 = arith.constant 10 : index
    %c0_31 = arith.constant 0 : index
    %c0_32 = arith.constant 0 : index
    %30 = vector.load %arg1[%c0_30, %c10, %c0_31, %c0_32] : memref<2x16x8x16xf32, #tpu.memory_space<vmem>>, vector<2x1x8x16xf32>
    %31 = vector.shape_cast %30 : vector<2x1x8x16xf32> to vector<2x8x16xf32>
    %32 = vector.shape_cast %31 : vector<2x8x16xf32> to vector<16x16xf32>
    %c0_33 = arith.constant 0 : index
    %c11 = arith.constant 11 : index
    %c0_34 = arith.constant 0 : index
    %c0_35 = arith.constant 0 : index
    %33 = vector.load %arg1[%c0_33, %c11, %c0_34, %c0_35] : memref<2x16x8x16xf32, #tpu.memory_space<vmem>>, vector<2x1x8x16xf32>
    %34 = vector.shape_cast %33 : vector<2x1x8x16xf32> to vector<2x8x16xf32>
    %35 = vector.shape_cast %34 : vector<2x8x16xf32> to vector<16x16xf32>
    %c0_36 = arith.constant 0 : index
    %c12 = arith.constant 12 : index
    %c0_37 = arith.constant 0 : index
    %c0_38 = arith.constant 0 : index
    %36 = vector.load %arg1[%c0_36, %c12, %c0_37, %c0_38] : memref<2x16x8x16xf32, #tpu.memory_space<vmem>>, vector<2x1x8x16xf32>
    %37 = vector.shape_cast %36 : vector<2x1x8x16xf32> to vector<2x8x16xf32>
    %38 = vector.shape_cast %37 : vector<2x8x16xf32> to vector<16x16xf32>
    %c0_39 = arith.constant 0 : index
    %c13 = arith.constant 13 : index
    %c0_40 = arith.constant 0 : index
    %c0_41 = arith.constant 0 : index
    %39 = vector.load %arg1[%c0_39, %c13, %c0_40, %c0_41] : memref<2x16x8x16xf32, #tpu.memory_space<vmem>>, vector<2x1x8x16xf32>
    %40 = vector.shape_cast %39 : vector<2x1x8x16xf32> to vector<2x8x16xf32>
    %41 = vector.shape_cast %40 : vector<2x8x16xf32> to vector<16x16xf32>
    %c0_42 = arith.constant 0 : index
    %c14 = arith.constant 14 : index
    %c0_43 = arith.constant 0 : index
    %c0_44 = arith.constant 0 : index
    %42 = vector.load %arg1[%c0_42, %c14, %c0_43, %c0_44] : memref<2x16x8x16xf32, #tpu.memory_space<vmem>>, vector<2x1x8x16xf32>
    %43 = vector.shape_cast %42 : vector<2x1x8x16xf32> to vector<2x8x16xf32>
    %44 = vector.shape_cast %43 : vector<2x8x16xf32> to vector<16x16xf32>
    %c0_45 = arith.constant 0 : index
    %c15 = arith.constant 15 : index
    %c0_46 = arith.constant 0 : index
    %c0_47 = arith.constant 0 : index
    %45 = vector.load %arg1[%c0_45, %c15, %c0_46, %c0_47] : memref<2x16x8x16xf32, #tpu.memory_space<vmem>>, vector<2x1x8x16xf32>
    %46 = vector.shape_cast %45 : vector<2x1x8x16xf32> to vector<2x8x16xf32>
    %47 = vector.shape_cast %46 : vector<2x8x16xf32> to vector<16x16xf32>
    %48 = tpu.concatenate %2, %5, %8, %11, %14, %17, %20, %23, %26, %29, %32, %35, %38, %41, %44, %47 in 1 : vector<16x16xf32>, vector<16x16xf32>, vector<16x16xf32>, vector<16x16xf32>, vector<16x16xf32>, vector<16x16xf32>, vector<16x16xf32>, vector<16x16xf32>, vector<16x16xf32>, vector<16x16xf32>, vector<16x16xf32>, vector<16x16xf32>, vector<16x16xf32>, vector<16x16xf32>, vector<16x16xf32>, vector<16x16xf32> -> vector<16x256xf32>
    %c1_i32 = arith.constant 1 : i32
    %49 = tpu.dynamic_rotate %48 by %c1_i32 dim 0 : vector<16x256xf32>, i32 -> vector<16x256xf32>
    %50 = tpu.iota {dimensions = array<i32: 1>} : vector<2x8x256xi32>
    %51 = vector.shape_cast %50 : vector<2x8x256xi32> to vector<16x256xi32>
    %c1_i32_48 = arith.constant 1 : i32
    %52 = vector.broadcast %c1_i32_48 : i32 to vector<16x256xi32>
    %53 = arith.cmpi sge, %51, %52 : vector<16x256xi32>
    %cst = arith.constant 0.000000e+00 : f32
    %54 = vector.broadcast %cst : f32 to vector<16x256xf32>
    %55 = arith.select %53, %49, %54 : vector<16x256xi1>, vector<16x256xf32>
    %cst_49 = arith.constant 0xFF800000 : f32
    %56 = vector.broadcast %cst_49 : f32 to vector<16x256xf32>
    %57 = arith.select %53, %49, %56 : vector<16x256xi1>, vector<16x256xf32>
    %c15_i32 = arith.constant 15 : i32
    %58 = tpu.dynamic_rotate %48 by %c15_i32 dim 0 : vector<16x256xf32>, i32 -> vector<16x256xf32>
    %59 = tpu.iota {dimensions = array<i32: 1>} : vector<2x8x256xi32>
    %60 = vector.shape_cast %59 : vector<2x8x256xi32> to vector<16x256xi32>
    %c7_i32 = arith.constant 7 : i32
    %61 = vector.broadcast %c7_i32 : i32 to vector<16x256xi32>
    %62 = arith.cmpi slt, %60, %61 : vector<16x256xi32>
    %cst_50 = arith.constant 0.000000e+00 : f32
    %63 = vector.broadcast %cst_50 : f32 to vector<16x256xf32>
    %64 = arith.select %62, %58, %63 : vector<16x256xi1>, vector<16x256xf32>
    %cst_51 = arith.constant 0xFF800000 : f32
    %65 = vector.broadcast %cst_51 : f32 to vector<16x256xf32>
    %66 = arith.select %62, %58, %65 : vector<16x256xi1>, vector<16x256xf32>
    %c2_i32 = arith.constant 2 : i32
    %67 = tpu.dynamic_rotate %48 by %c2_i32 dim 0 : vector<16x256xf32>, i32 -> vector<16x256xf32>
    %68 = tpu.iota {dimensions = array<i32: 1>} : vector<2x8x256xi32>
    %69 = vector.shape_cast %68 : vector<2x8x256xi32> to vector<16x256xi32>
    %c2_i32_52 = arith.constant 2 : i32
    %70 = vector.broadcast %c2_i32_52 : i32 to vector<16x256xi32>
    %71 = arith.cmpi sge, %69, %70 : vector<16x256xi32>
    %cst_53 = arith.constant 0.000000e+00 : f32
    %72 = vector.broadcast %cst_53 : f32 to vector<16x256xf32>
    %73 = arith.select %71, %67, %72 : vector<16x256xi1>, vector<16x256xf32>
    %cst_54 = arith.constant 0xFF800000 : f32
    %74 = vector.broadcast %cst_54 : f32 to vector<16x256xf32>
    %75 = arith.select %71, %67, %74 : vector<16x256xi1>, vector<16x256xf32>
    %c14_i32 = arith.constant 14 : i32
    %76 = tpu.dynamic_rotate %48 by %c14_i32 dim 0 : vector<16x256xf32>, i32 -> vector<16x256xf32>
    %77 = tpu.iota {dimensions = array<i32: 1>} : vector<2x8x256xi32>
    %78 = vector.shape_cast %77 : vector<2x8x256xi32> to vector<16x256xi32>
    %c6_i32 = arith.constant 6 : i32
    %79 = vector.broadcast %c6_i32 : i32 to vector<16x256xi32>
    %80 = arith.cmpi slt, %78, %79 : vector<16x256xi32>
    %cst_55 = arith.constant 0.000000e+00 : f32
    %81 = vector.broadcast %cst_55 : f32 to vector<16x256xf32>
    %82 = arith.select %80, %76, %81 : vector<16x256xi1>, vector<16x256xf32>
    %cst_56 = arith.constant 0xFF800000 : f32
    %83 = vector.broadcast %cst_56 : f32 to vector<16x256xf32>
    %84 = arith.select %80, %76, %83 : vector<16x256xi1>, vector<16x256xf32>
    %85 = arith.addf %55, %48 : vector<16x256xf32>
    %86 = arith.addf %85, %64 : vector<16x256xf32>
    %cst_57 = arith.constant 0.333333343 : f32
    %87 = vector.broadcast %cst_57 : f32 to vector<16x256xf32>
    %88 = arith.mulf %86, %87 : vector<16x256xf32>
    %89 = arith.maximumf %57, %48 : vector<16x256xf32>
    %90 = arith.maximumf %89, %66 : vector<16x256xf32>
    %91 = arith.addf %88, %90 : vector<16x256xf32>
    %92 = arith.addf %73, %55 : vector<16x256xf32>
    %93 = arith.addf %92, %48 : vector<16x256xf32>
    %94 = arith.addf %93, %64 : vector<16x256xf32>
    %95 = arith.addf %94, %82 : vector<16x256xf32>
    %cst_58 = arith.constant 2.000000e-01 : f32
    %96 = vector.broadcast %cst_58 : f32 to vector<16x256xf32>
    %97 = arith.mulf %95, %96 : vector<16x256xf32>
    %98 = arith.maximumf %75, %57 : vector<16x256xf32>
    %99 = arith.maximumf %48, %66 : vector<16x256xf32>
    %100 = arith.maximumf %98, %99 : vector<16x256xf32>
    %101 = arith.maximumf %100, %84 : vector<16x256xf32>
    %102 = arith.addf %97, %101 : vector<16x256xf32>
    %c0_59 = arith.constant 0 : index
    %c0_60 = arith.constant 0 : index
    %c0_61 = arith.constant 0 : index
    %103 = vector.load %arg2[%c0_59, %c0_60, %c0_61] : memref<3x256x128xf32, #tpu.memory_space<vmem>>, vector<1x256x128xf32>
    %104 = vector.shape_cast %103 : vector<1x256x128xf32> to vector<256x128xf32>
    %cst_62 = arith.constant dense<0.000000e+00> : vector<16x128xf32>
    %105 = tpu.matmul %55, %104, %cst_62 {dimension_numbers = #tpu.dot_dimension_numbers<[1], [0], [0], [1], [0, 0, 1, 1], [], []>} : vector<16x256xf32>, vector<256x128xf32>, vector<16x128xf32> -> vector<16x128xf32>
    %c1_63 = arith.constant 1 : index
    %c0_64 = arith.constant 0 : index
    %c0_65 = arith.constant 0 : index
    %106 = vector.load %arg2[%c1_63, %c0_64, %c0_65] : memref<3x256x128xf32, #tpu.memory_space<vmem>>, vector<1x256x128xf32>
    %107 = vector.shape_cast %106 : vector<1x256x128xf32> to vector<256x128xf32>
    %cst_66 = arith.constant dense<0.000000e+00> : vector<16x128xf32>
    %108 = tpu.matmul %48, %107, %cst_66 {dimension_numbers = #tpu.dot_dimension_numbers<[1], [0], [0], [1], [0, 0, 1, 1], [], []>} : vector<16x256xf32>, vector<256x128xf32>, vector<16x128xf32> -> vector<16x128xf32>
    %109 = arith.addf %105, %108 : vector<16x128xf32>
    %c2_67 = arith.constant 2 : index
    %c0_68 = arith.constant 0 : index
    %c0_69 = arith.constant 0 : index
    %110 = vector.load %arg2[%c2_67, %c0_68, %c0_69] : memref<3x256x128xf32, #tpu.memory_space<vmem>>, vector<1x256x128xf32>
    %111 = vector.shape_cast %110 : vector<1x256x128xf32> to vector<256x128xf32>
    %cst_70 = arith.constant dense<0.000000e+00> : vector<16x128xf32>
    %112 = tpu.matmul %64, %111, %cst_70 {dimension_numbers = #tpu.dot_dimension_numbers<[1], [0], [0], [1], [0, 0, 1, 1], [], []>} : vector<16x256xf32>, vector<256x128xf32>, vector<16x128xf32> -> vector<16x128xf32>
    %113 = arith.addf %109, %112 : vector<16x128xf32>
    %cst_71 = arith.constant 0.000000e+00 : f32
    %114 = vector.broadcast %cst_71 : f32 to vector<16x128xf32>
    %115 = arith.cmpf ogt, %113, %114 : vector<16x128xf32>
    %cst_72 = arith.constant 0.00999999977 : f32
    %116 = vector.broadcast %cst_72 : f32 to vector<16x128xf32>
    %117 = arith.mulf %116, %113 : vector<16x128xf32>
    %118 = arith.select %115, %113, %117 : vector<16x128xi1>, vector<16x128xf32>
    %119 = vector.extract_strided_slice %118 {offsets = [0, 0], sizes = [16, 64], strides = [1, 1]} : vector<16x128xf32> to vector<16x64xf32>
    %120 = vector.extract_strided_slice %118 {offsets = [0, 64], sizes = [16, 64], strides = [1, 1]} : vector<16x128xf32> to vector<16x64xf32>
    %c0_73 = arith.constant 0 : index
    %c0_74 = arith.constant 0 : index
    %121 = vector.load %arg3[%c0_73, %c0_74] : memref<64x256xf32, #tpu.memory_space<vmem>>, vector<64x256xf32>
    %cst_75 = arith.constant dense<0.000000e+00> : vector<16x256xf32>
    %122 = tpu.matmul %119, %121, %cst_75 {dimension_numbers = #tpu.dot_dimension_numbers<[1], [0], [0], [1], [0, 0, 1, 1], [], []>} : vector<16x64xf32>, vector<64x256xf32>, vector<16x256xf32> -> vector<16x256xf32>
    %cst_76 = arith.constant 0.000000e+00 : f32
    %123 = vector.broadcast %cst_76 : f32 to vector<16x256xf32>
    %124 = arith.subf %123, %122 : vector<16x256xf32>
    %125 = math.exp %124 : vector<16x256xf32>
    %cst_77 = arith.constant 1.000000e+00 : f32
    %126 = vector.broadcast %cst_77 : f32 to vector<16x256xf32>
    %127 = arith.addf %126, %125 : vector<16x256xf32>
    %cst_78 = arith.constant 1.000000e+00 : f32
    %128 = vector.broadcast %cst_78 : f32 to vector<16x256xf32>
    %129 = arith.divf %128, %127 : vector<16x256xf32>
    %c1_i32_79 = arith.constant 1 : i32
    %130 = tpu.dynamic_rotate %120 by %c1_i32_79 dim 0 : vector<16x64xf32>, i32 -> vector<16x64xf32>
    %131 = tpu.iota {dimensions = array<i32: 1>} : vector<2x8x64xi32>
    %132 = vector.shape_cast %131 : vector<2x8x64xi32> to vector<16x64xi32>
    %c1_i32_80 = arith.constant 1 : i32
    %133 = vector.broadcast %c1_i32_80 : i32 to vector<16x64xi32>
    %134 = arith.cmpi sge, %132, %133 : vector<16x64xi32>
    %cst_81 = arith.constant 0.000000e+00 : f32
    %135 = vector.broadcast %cst_81 : f32 to vector<16x64xf32>
    %136 = arith.select %134, %130, %135 : vector<16x64xi1>, vector<16x64xf32>
    %c15_i32_82 = arith.constant 15 : i32
    %137 = tpu.dynamic_rotate %120 by %c15_i32_82 dim 0 : vector<16x64xf32>, i32 -> vector<16x64xf32>
    %138 = tpu.iota {dimensions = array<i32: 1>} : vector<2x8x64xi32>
    %139 = vector.shape_cast %138 : vector<2x8x64xi32> to vector<16x64xi32>
    %c7_i32_83 = arith.constant 7 : i32
    %140 = vector.broadcast %c7_i32_83 : i32 to vector<16x64xi32>
    %141 = arith.cmpi slt, %139, %140 : vector<16x64xi32>
    %cst_84 = arith.constant 0.000000e+00 : f32
    %142 = vector.broadcast %cst_84 : f32 to vector<16x64xf32>
    %143 = arith.select %141, %137, %142 : vector<16x64xi1>, vector<16x64xf32>
    %c0_85 = arith.constant 0 : index
    %c0_86 = arith.constant 0 : index
    %c0_87 = arith.constant 0 : index
    %144 = vector.load %arg4[%c0_85, %c0_86, %c0_87] : memref<3x64x256xf32, #tpu.memory_space<vmem>>, vector<1x64x256xf32>
    %145 = vector.shape_cast %144 : vector<1x64x256xf32> to vector<64x256xf32>
    %cst_88 = arith.constant dense<0.000000e+00> : vector<16x256xf32>
    %146 = tpu.matmul %136, %145, %cst_88 {dimension_numbers = #tpu.dot_dimension_numbers<[1], [0], [0], [1], [0, 0, 1, 1], [], []>} : vector<16x64xf32>, vector<64x256xf32>, vector<16x256xf32> -> vector<16x256xf32>
    %c1_89 = arith.constant 1 : index
    %c0_90 = arith.constant 0 : index
    %c0_91 = arith.constant 0 : index
    %147 = vector.load %arg4[%c1_89, %c0_90, %c0_91] : memref<3x64x256xf32, #tpu.memory_space<vmem>>, vector<1x64x256xf32>
    %148 = vector.shape_cast %147 : vector<1x64x256xf32> to vector<64x256xf32>
    %cst_92 = arith.constant dense<0.000000e+00> : vector<16x256xf32>
    %149 = tpu.matmul %120, %148, %cst_92 {dimension_numbers = #tpu.dot_dimension_numbers<[1], [0], [0], [1], [0, 0, 1, 1], [], []>} : vector<16x64xf32>, vector<64x256xf32>, vector<16x256xf32> -> vector<16x256xf32>
    %150 = arith.addf %146, %149 : vector<16x256xf32>
    %c2_93 = arith.constant 2 : index
    %c0_94 = arith.constant 0 : index
    %c0_95 = arith.constant 0 : index
    %151 = vector.load %arg4[%c2_93, %c0_94, %c0_95] : memref<3x64x256xf32, #tpu.memory_space<vmem>>, vector<1x64x256xf32>
    %152 = vector.shape_cast %151 : vector<1x64x256xf32> to vector<64x256xf32>
    %cst_96 = arith.constant dense<0.000000e+00> : vector<16x256xf32>
    %153 = tpu.matmul %143, %152, %cst_96 {dimension_numbers = #tpu.dot_dimension_numbers<[1], [0], [0], [1], [0, 0, 1, 1], [], []>} : vector<16x64xf32>, vector<64x256xf32>, vector<16x256xf32> -> vector<16x256xf32>
    %154 = arith.addf %150, %153 : vector<16x256xf32>
    %cst_97 = arith.constant 0.000000e+00 : f32
    %155 = vector.broadcast %cst_97 : f32 to vector<16x256xf32>
    %156 = arith.subf %155, %154 : vector<16x256xf32>
    %157 = math.exp %156 : vector<16x256xf32>
    %cst_98 = arith.constant 1.000000e+00 : f32
    %158 = vector.broadcast %cst_98 : f32 to vector<16x256xf32>
    %159 = arith.addf %158, %157 : vector<16x256xf32>
    %cst_99 = arith.constant 1.000000e+00 : f32
    %160 = vector.broadcast %cst_99 : f32 to vector<16x256xf32>
    %161 = arith.divf %160, %159 : vector<16x256xf32>
    %162 = arith.mulf %91, %129 : vector<16x256xf32>
    %163 = arith.mulf %102, %161 : vector<16x256xf32>
    %164 = arith.addf %162, %163 : vector<16x256xf32>
    %165 = vector.shape_cast %164 : vector<16x256xf32> to vector<2x8x256xf32>
    %cst_100 = arith.constant dense<0xFF800000> : vector<2x256xf32>
    %166 = vector.multi_reduction <maximumf>, %165, %cst_100 [1] : vector<2x8x256xf32> to vector<2x256xf32>
    %167 = vector.shape_cast %166 : vector<2x256xf32> to vector<1x2x256xf32>
    %c0_101 = arith.constant 0 : index
    %c0_102 = arith.constant 0 : index
    %c0_103 = arith.constant 0 : index
    %168 = vector.load %arg5[%c0_101, %c0_102, %c0_103] : memref<1x2x256xf32, #tpu.memory_space<vmem>>, vector<1x2x256xf32>
    tpu.vector_store %arg5[%c0_101, %c0_102, %c0_103], %167 {strides = array<i32>} : memref<1x2x256xf32, #tpu.memory_space<vmem>>, vector<1x2x256xf32>,
    return
  }
  func.func @transform_0(%arg0: i32) -> (i32, i32, i32, i32) {
    %c0_i32 = arith.constant 0 : i32
    %c0_i32_0 = arith.constant 0 : i32
    %c0_i32_1 = arith.constant 0 : i32
    %c0_i32_2 = arith.constant 0 : i32
    return %arg0, %c0_i32, %c0_i32_0, %c0_i32_1 : i32, i32, i32, i32
  }
  func.func @transform_1(%arg0: i32) -> (i32, i32, i32) {
    %c0_i32 = arith.constant 0 : i32
    %c0_i32_0 = arith.constant 0 : i32
    %c0_i32_1 = arith.constant 0 : i32
    %c0_i32_2 = arith.constant 0 : i32
    return %c0_i32, %c0_i32_0, %c0_i32_1 : i32, i32, i32
  }
  func.func @transform_2(%arg0: i32) -> (i32, i32) {
    %c0_i32 = arith.constant 0 : i32
    %c0_i32_0 = arith.constant 0 : i32
    %c0_i32_1 = arith.constant 0 : i32
    return %c0_i32, %c0_i32_0 : i32, i32
  }
  func.func @transform_3(%arg0: i32) -> (i32, i32, i32) {
    %c0_i32 = arith.constant 0 : i32
    %c0_i32_0 = arith.constant 0 : i32
    %c0_i32_1 = arith.constant 0 : i32
    %c0_i32_2 = arith.constant 0 : i32
    return %c0_i32, %c0_i32_0, %c0_i32_1 : i32, i32, i32
  }
  func.func @transform_4(%arg0: i32) -> (i32, i32, i32) {
    %c0_i32 = arith.constant 0 : i32
    %c0_i32_0 = arith.constant 0 : i32
    %c0_i32_1 = arith.constant 0 : i32
    return %arg0, %c0_i32, %c0_i32_0 : i32, i32, i32
  }
}

</mosaic_0001>

<llo_original>
// kernel: temporal_feature_aggregator.1
$region0: #{temporal_feature_aggregator.1}
  #allocation0 [shape = 'u32[]', space=smem, size = 0x4, offset = 0x4, fixed_abs, tag = 'smem constant byte address 0x4 - core index']
  #allocation1 [shape = 'u32[144,128]{1,0:T(1,128)}', space=vmem, size = 0x12000, scoped, tag = 'internal scratch']
  %s0 = inlined_call_operand.hbm [shape: f32[2,16,8,16], index: 0, kind: input, shape index: {}]
  %s1 = inlined_call_operand.hbm [shape: f32[3,256,128], index: 1, kind: input, shape index: {}]
  %s2 = inlined_call_operand.hbm [shape: f32[64,256], index: 2, kind: input, shape index: {}]
  %s3 = inlined_call_operand.hbm [shape: f32[3,64,256], index: 3, kind: input, shape index: {}]
  %s4 = inlined_call_operand.vmem [shape: f32[1,2,256], index: 4, kind: output, shape index: {}]
  %s5 = sld [smem:[#allocation0]]
  $region42: #{temporal_feature_aggregator.1} parent=0
    _
  %s7 = ssub.s32 1, %s5
  %s8 = scalar_select 0, %s7, %s5
  $region1: #{temporal_feature_aggregator.1} parent=0
    #allocation2 [shape = 'u8[131072]{0}', space=vmem, size = 0x20000, scoped, tag = 'input window, operand 0, single buffered']
    #allocation3 [shape = 's32[1]{0}', space=sflag, size = 0x4, scoped, tag = 'scoped memory for temporal_feature_aggregator.1']
    #allocation4 [shape = 'u8[393216]{0}', space=vmem, size = 0x60000, scoped, tag = 'input window, operand 1, single buffered']
    #allocation5 [shape = 's32[1]{0}', space=sflag, size = 0x4, scoped, tag = 'scoped memory for temporal_feature_aggregator.1']
    #allocation6 [shape = 'u8[65536]{0}', space=vmem, size = 0x10000, scoped, tag = 'input window, operand 2, single buffered']
    #allocation7 [shape = 'u8[196608]{0}', space=vmem, size = 0x30000, scoped, tag = 'input window, operand 3, single buffered']
    #allocation8 [shape = 's32[1]{0}', space=sflag, size = 0x4, scoped, tag = 'scoped memory for temporal_feature_aggregator.1']
    %9 = vsyncpa [#allocation3], 0
    %10 = vsyncpa [#allocation5], 0
    %11 = vsyncpa [#allocation8], 0
    // Predicated region
    $region2: #{temporal_feature_aggregator.1} parent=1 // pred_check
      _
    $region3: #{temporal_feature_aggregator.1} parent=1 // pred_check_branch
      %13 = sbr.rel (0) target = $region5
    $region4: #{temporal_feature_aggregator.1} parent=1 // pred_region
      %s15 = ssub.s32 4096, 4096
      %16 = vsyncadd [#allocation3], %s15
      %s17 = sshll.u32 [#allocation2], 4
      %s18 = int_to_ptr.vmem [resolvable:$true] %s17
      %23 = dma.hbm_to_vmem [thread:$0]  %s0, 4096, %s18, [#allocation3], 128, 128, 8
    $region5: #{temporal_feature_aggregator.1} parent=1 // pred_fallthru
      _
    // Predicated region
    $region6: #{temporal_feature_aggregator.1} parent=1 // pred_check
      _
    $region7: #{temporal_feature_aggregator.1} parent=1 // pred_check_branch
      %25 = sbr.rel (0) target = $region9
    $region8: #{temporal_feature_aggregator.1} parent=1 // pred_region
      %s27 = ssub.s32 12288, 12288
      %28 = vsyncadd [#allocation5], %s27
      %s29 = sshll.u32 [#allocation4], 4
      %s30 = int_to_ptr.vmem [resolvable:$true] %s29
      %35 = dma.hbm_to_vmem [thread:$0]  %s1, 12288, %s30, [#allocation5], 128, 128, 8
    $region9: #{temporal_feature_aggregator.1} parent=1 // pred_fallthru
      _
    // Predicated region
    $region10: #{temporal_feature_aggregator.1} parent=1 // pred_check
      _
    $region11: #{temporal_feature_aggregator.1} parent=1 // pred_check_branch
      %37 = sbr.rel (0) target = $region13
    $region12: #{temporal_feature_aggregator.1} parent=1 // pred_region
      %s39 = ssub.s32 2048, 2048
      %40 = vsyncadd [#allocation5], %s39
      %s41 = sshll.u32 [#allocation6], 4
      %s42 = int_to_ptr.vmem [resolvable:$true] %s41
      %47 = dma.hbm_to_vmem [thread:$0]  %s2, 2048, %s42, [#allocation5], 256, 256, 16
    $region13: #{temporal_feature_aggregator.1} parent=1 // pred_fallthru
      _
    // Predicated region
    $region14: #{temporal_feature_aggregator.1} parent=1 // pred_check
      _
    $region15: #{temporal_feature_aggregator.1} parent=1 // pred_check_branch
      %49 = sbr.rel (0) target = $region17
    $region16: #{temporal_feature_aggregator.1} parent=1 // pred_region
      %s51 = ssub.s32 6144, 6144
      %52 = vsyncadd [#allocation8], %s51
      %s53 = sshll.u32 [#allocation7], 4
      %s54 = int_to_ptr.vmem [resolvable:$true] %s53
      %59 = dma.hbm_to_vmem [thread:$0]  %s3, 6144, %s54, [#allocation8], 256, 256, 16
    $region17: #{temporal_feature_aggregator.1} parent=1 // pred_fallthru
      _
    // Predicated region
    $region18: #{temporal_feature_aggregator.1} parent=1 // pred_check
      _
    $region19: #{temporal_feature_aggregator.1} parent=1 // pred_check_branch
      %61 = sbr.rel (0) target = $region21
    $region20: #{temporal_feature_aggregator.1} parent=1 // pred_region
      %62 = dma.done [#allocation3], 4096
    $region21: #{temporal_feature_aggregator.1} parent=1 // pred_fallthru
      _
    // Predicated region
    $region22: #{temporal_feature_aggregator.1} parent=1 // pred_check
      _
    $region23: #{temporal_feature_aggregator.1} parent=1 // pred_check_branch
      %64 = sbr.rel (0) target = $region25
    $region24: #{temporal_feature_aggregator.1} parent=1 // pred_region
      %65 = dma.done [#allocation5], 12288
    $region25: #{temporal_feature_aggregator.1} parent=1 // pred_fallthru
      _
    // Predicated region
    $region26: #{temporal_feature_aggregator.1} parent=1 // pred_check
      _
    $region27: #{temporal_feature_aggregator.1} parent=1 // pred_check_branch
      %67 = sbr.rel (0) target = $region29
    $region28: #{temporal_feature_aggregator.1} parent=1 // pred_region
      %68 = dma.done [#allocation5], 2048
    $region29: #{temporal_feature_aggregator.1} parent=1 // pred_fallthru
      _
    // Predicated region
    $region30: #{temporal_feature_aggregator.1} parent=1 // pred_check
      _
    $region31: #{temporal_feature_aggregator.1} parent=1 // pred_check_branch
      %70 = sbr.rel (0) target = $region33
    $region32: #{temporal_feature_aggregator.1} parent=1 // pred_region
      %71 = dma.done [#allocation8], 6144
    $region33: #{temporal_feature_aggregator.1} parent=1 // pred_fallthru
      _
    %v72 = vld [vmem:[#allocation2] sm:$0xff]
    %v73 = vld [vmem:[#allocation2 + $0x80] sm:$0xff]
    %s74 = scalar_lea.vmem [#allocation2], 8
    %v75 = vld [vmem:[%s74] sm:$0xff]
    %v76 = vld [vmem:[%s74 + $0x80] sm:$0xff]
    %s77 = scalar_lea.vmem [#allocation2], 16
    %v78 = vld [vmem:[%s77] sm:$0xff]
    %v79 = vld [vmem:[%s77 + $0x80] sm:$0xff]
    %s80 = scalar_lea.vmem [#allocation2], 24
    %v81 = vld [vmem:[%s80] sm:$0xff]
    %v82 = vld [vmem:[%s80 + $0x80] sm:$0xff]
    %s83 = scalar_lea.vmem [#allocation2], 32
    %v84 = vld [vmem:[%s83] sm:$0xff]
    %v85 = vld [vmem:[%s83 + $0x80] sm:$0xff]
    %s86 = scalar_lea.vmem [#allocation2], 40
    %v87 = vld [vmem:[%s86] sm:$0xff]
    %v88 = vld [vmem:[%s86 + $0x80] sm:$0xff]
    %s89 = scalar_lea.vmem [#allocation2], 48
    %v90 = vld [vmem:[%s89] sm:$0xff]
    %v91 = vld [vmem:[%s89 + $0x80] sm:$0xff]
    %s92 = scalar_lea.vmem [#allocation2], 56
    %v93 = vld [vmem:[%s92] sm:$0xff]
    %v94 = vld [vmem:[%s92 + $0x80] sm:$0xff]
    %s95 = scalar_lea.vmem [#allocation2], 64
    %v96 = vld [vmem:[%s95] sm:$0xff]
    %v97 = vld [vmem:[%s95 + $0x80] sm:$0xff]
    %s98 = scalar_lea.vmem [#allocation2], 72
    %v99 = vld [vmem:[%s98] sm:$0xff]
    %v100 = vld [vmem:[%s98 + $0x80] sm:$0xff]
    %s101 = scalar_lea.vmem [#allocation2], 80
    %v102 = vld [vmem:[%s101] sm:$0xff]
    %v103 = vld [vmem:[%s101 + $0x80] sm:$0xff]
    %s104 = scalar_lea.vmem [#allocation2], 88
    %v105 = vld [vmem:[%s104] sm:$0xff]
    %v106 = vld [vmem:[%s104 + $0x80] sm:$0xff]
    %s107 = scalar_lea.vmem [#allocation2], 96
    %v108 = vld [vmem:[%s107] sm:$0xff]
    %v109 = vld [vmem:[%s107 + $0x80] sm:$0xff]
    %s110 = scalar_lea.vmem [#allocation2], 104
    %v111 = vld [vmem:[%s110] sm:$0xff]
    %v112 = vld [vmem:[%s110 + $0x80] sm:$0xff]
    %s113 = scalar_lea.vmem [#allocation2], 112
    %v114 = vld [vmem:[%s113] sm:$0xff]
    %v115 = vld [vmem:[%s113 + $0x80] sm:$0xff]
    %s116 = scalar_lea.vmem [#allocation2], 120
    %v117 = vld [vmem:[%s116] sm:$0xff]
    %v118 = vld [vmem:[%s116 + $0x80] sm:$0xff]
    %121 = vrot.lane.b32.xlu0 %v75, 16
    %v122 = vpop.permute.xlu0 %121
    %123 = vrot.lane.b32.xlu0 %v76, 16
    %v124 = vpop.permute.xlu0 %123
    %129 = vrot.lane.b32.xlu0 %v78, 32
    %v130 = vpop.permute.xlu0 %129
    %131 = vrot.lane.b32.xlu0 %v79, 32
    %v132 = vpop.permute.xlu0 %131
    %137 = vrot.lane.b32.xlu0 %v81, 48
    %v138 = vpop.permute.xlu0 %137
    %139 = vrot.lane.b32.xlu0 %v82, 48
    %v140 = vpop.permute.xlu0 %139
    %145 = vrot.lane.b32.xlu0 %v84, 64
    %v146 = vpop.permute.xlu0 %145
    %147 = vrot.lane.b32.xlu0 %v85, 64
    %v148 = vpop.permute.xlu0 %147
    %153 = vrot.lane.b32.xlu0 %v87, 80
    %v154 = vpop.permute.xlu0 %153
    %155 = vrot.lane.b32.xlu0 %v88, 80
    %v156 = vpop.permute.xlu0 %155
    %161 = vrot.lane.b32.xlu0 %v90, 96
    %v162 = vpop.permute.xlu0 %161
    %163 = vrot.lane.b32.xlu0 %v91, 96
    %v164 = vpop.permute.xlu0 %163
    %169 = vrot.lane.b32.xlu0 %v93, 112
    %v170 = vpop.permute.xlu0 %169
    %171 = vrot.lane.b32.xlu0 %v94, 112
    %v172 = vpop.permute.xlu0 %171
    %177 = vrot.lane.b32.xlu0 %v99, 16
    %v178 = vpop.permute.xlu0 %177
    %179 = vrot.lane.b32.xlu0 %v100, 16
    %v180 = vpop.permute.xlu0 %179
    %185 = vrot.lane.b32.xlu0 %v102, 32
    %v186 = vpop.permute.xlu0 %185
    %187 = vrot.lane.b32.xlu0 %v103, 32
    %v188 = vpop.permute.xlu0 %187
    %193 = vrot.lane.b32.xlu0 %v105, 48
    %v194 = vpop.permute.xlu0 %193
    %195 = vrot.lane.b32.xlu0 %v106, 48
    %v196 = vpop.permute.xlu0 %195
    %201 = vrot.lane.b32.xlu0 %v108, 64
    %v202 = vpop.permute.xlu0 %201
    %203 = vrot.lane.b32.xlu0 %v109, 64
    %v204 = vpop.permute.xlu0 %203
    %209 = vrot.lane.b32.xlu0 %v111, 80
    %v210 = vpop.permute.xlu0 %209
    %211 = vrot.lane.b32.xlu0 %v112, 80
    %v212 = vpop.permute.xlu0 %211
    %217 = vrot.lane.b32.xlu0 %v114, 96
    %v218 = vpop.permute.xlu0 %217
    %219 = vrot.lane.b32.xlu0 %v115, 96
    %v220 = vpop.permute.xlu0 %219
    %225 = vrot.lane.b32.xlu0 %v117, 112
    %v226 = vpop.permute.xlu0 %225
    %227 = vrot.lane.b32.xlu0 %v118, 112
    %v228 = vpop.permute.xlu0 %227
    %vm231 = vcmask 130048
    %v232 = vsel %vm231, %v72, %v122
    %v233 = vsel %vm231, %v73, %v124
    %vm234 = vcmask 261120
    %v235 = vsel %vm234, %v232, %v130
    %v236 = vsel %vm234, %v233, %v132
    %vm237 = vcmask 392192
    %v238 = vsel %vm237, %v235, %v138
    %v239 = vsel %vm237, %v236, %v140
    %vm240 = vcmask 523264
    %v241 = vsel %vm240, %v238, %v146
    %v242 = vsel %vm240, %v239, %v148
    %vm243 = vcmask 654336
    %v244 = vsel %vm243, %v241, %v154
    %v245 = vsel %vm243, %v242, %v156
    %vm246 = vcmask 785408
    %v247 = vsel %vm246, %v244, %v162
    %v248 = vsel %vm246, %v245, %v164
    %vm249 = vcmask 916480
    %v250 = vsel %vm249, %v247, %v170
    %v251 = vsel %vm249, %v248, %v172
    %v252 = vsel %vm231, %v96, %v178
    %v253 = vsel %vm231, %v97, %v180
    %v254 = vsel %vm234, %v252, %v186
    %v255 = vsel %vm234, %v253, %v188
    %v256 = vsel %vm237, %v254, %v194
    %v257 = vsel %vm237, %v255, %v196
    %v258 = vsel %vm240, %v256, %v202
    %v259 = vsel %vm240, %v257, %v204
    %v260 = vsel %vm243, %v258, %v210
    %v261 = vsel %vm243, %v259, %v212
    %v262 = vsel %vm246, %v260, %v218
    %v263 = vsel %vm246, %v261, %v220
    %v264 = vsel %vm249, %v262, %v226
    %v265 = vsel %vm249, %v263, %v228
    %v266 = vrot.slane %v250, 7
    %v267 = vrot.slane %v264, 7
    %v268 = vrot.slane %v251, 7
    %v269 = vrot.slane %v265, 7
    %v270 = vlaneseq
    %v271 = vshrl.u32 %v270, 7
    %vm272 = vcmp.lt.s32.totalorder %v271, 1
    %v273 = vsel %vm272, %v266, %v268
    %v274 = vsel %vm272, %v267, %v269
    %v275 = vsel %vm272, %v268, %v266
    %v276 = vsel %vm272, %v269, %v267
    %vm277 = vcmp.ge.s32.totalorder %v271, 1
    %v278 = vsel %vm277, %v275, 0.0
    %v279 = vsel %vm277, %v276, 0.0
    %v280 = vsel %vm277, %v273, 0.0
    %v281 = vsel %vm277, %v274, 0.0
    %v282 = vsel %vm277, %v275, -inf
    %v283 = vsel %vm277, %v276, -inf
    %v284 = vsel %vm277, %v273, -inf
    %v285 = vsel %vm277, %v274, -inf
    %v286 = vrot.slane %v250, 1
    %v287 = vrot.slane %v264, 1
    %v288 = vrot.slane %v251, 1
    %v289 = vrot.slane %v265, 1
    %vm290 = vcmp.lt.s32.totalorder %v271, 7
    %v291 = vsel %vm290, %v286, %v288
    %v292 = vsel %vm290, %v287, %v289
    %v293 = vsel %vm290, %v288, %v286
    %v294 = vsel %vm290, %v289, %v287
    %v295 = vsel %vm290, %v291, 0.0
    %v296 = vsel %vm290, %v292, 0.0
    %v297 = vsel %vm290, %v293, 0.0
    %v298 = vsel %vm290, %v294, 0.0
    %v299 = vsel %vm290, %v291, -inf
    %v300 = vsel %vm290, %v292, -inf
    %v301 = vsel %vm290, %v293, -inf
    %v302 = vsel %vm290, %v294, -inf
    %v303 = vrot.slane %v250, 6
    %v304 = vrot.slane %v264, 6
    %v305 = vrot.slane %v251, 6
    %v306 = vrot.slane %v265, 6
    %vm307 = vcmp.lt.s32.totalorder %v271, 2
    %v308 = vsel %vm307, %v303, %v305
    %v309 = vsel %vm307, %v304, %v306
    %v310 = vsel %vm307, %v305, %v303
    %v311 = vsel %vm307, %v306, %v304
    %vm312 = vcmp.ge.s32.totalorder %v271, 2
    %v313 = vsel %vm312, %v310, 0.0
    %v314 = vsel %vm312, %v311, 0.0
    %v315 = vsel %vm312, %v308, 0.0
    %v316 = vsel %vm312, %v309, 0.0
    %v317 = vsel %vm312, %v310, -inf
    %v318 = vsel %vm312, %v311, -inf
    %v319 = vsel %vm312, %v308, -inf
    %v320 = vsel %vm312, %v309, -inf
    %v321 = vrot.slane %v250, 2
    %v322 = vrot.slane %v264, 2
    %v323 = vrot.slane %v251, 2
    %v324 = vrot.slane %v265, 2
    %vm325 = vcmp.lt.s32.totalorder %v271, 6
    %v326 = vsel %vm325, %v321, %v323
    %v327 = vsel %vm325, %v322, %v324
    %v328 = vsel %vm325, %v323, %v321
    %v329 = vsel %vm325, %v324, %v322
    %v330 = vsel %vm325, %v326, 0.0
    %v331 = vsel %vm325, %v327, 0.0
    %v332 = vsel %vm325, %v328, 0.0
    %v333 = vsel %vm325, %v329, 0.0
    %v334 = vsel %vm325, %v326, -inf
    %v335 = vsel %vm325, %v327, -inf
    %v336 = vsel %vm325, %v328, -inf
    %v337 = vsel %vm325, %v329, -inf
    %v338 = vadd.f32 %v278, %v250
    %v339 = vadd.f32 %v279, %v264
    %v340 = vadd.f32 %v280, %v251
    %v341 = vadd.f32 %v281, %v265
    %v342 = vadd.f32 %v338, %v295
    %v343 = vadd.f32 %v339, %v296
    %v344 = vadd.f32 %v340, %v297
    %v345 = vadd.f32 %v341, %v298
    %v346 = vmul.f32 %v342, 0.33333334
    %v347 = vmul.f32 %v343, 0.33333334
    %v348 = vmul.f32 %v344, 0.33333334
    %v349 = vmul.f32 %v345, 0.33333334
    %v350 = vmax.f32 %v282, %v250
    %v351 = vmax.f32 %v283, %v264
    %v352 = vmax.f32 %v284, %v251
    %v353 = vmax.f32 %v285, %v265
    %v354 = vmax.f32 %v350, %v299
    %v355 = vmax.f32 %v351, %v300
    %v356 = vmax.f32 %v352, %v301
    %v357 = vmax.f32 %v353, %v302
    %v358 = vadd.f32 %v346, %v354
    %v359 = vadd.f32 %v347, %v355
    %v360 = vadd.f32 %v348, %v356
    %v361 = vadd.f32 %v349, %v357
    %v362 = vadd.f32 %v313, %v278
    %v363 = vadd.f32 %v314, %v279
    %v364 = vadd.f32 %v315, %v280
    %v365 = vadd.f32 %v316, %v281
    %v366 = vadd.f32 %v362, %v250
    %v367 = vadd.f32 %v363, %v264
    %v368 = vadd.f32 %v364, %v251
    %v369 = vadd.f32 %v365, %v265
    %v370 = vadd.f32 %v366, %v295
    %v371 = vadd.f32 %v367, %v296
    %v372 = vadd.f32 %v368, %v297
    %v373 = vadd.f32 %v369, %v298
    %v374 = vadd.f32 %v370, %v330
    %v375 = vadd.f32 %v371, %v331
    %v376 = vadd.f32 %v372, %v332
    %v377 = vadd.f32 %v373, %v333
    %v378 = vmul.f32 %v374, 0.2
    %v379 = vmul.f32 %v375, 0.2
    %v380 = vmul.f32 %v376, 0.2
    %v381 = vmul.f32 %v377, 0.2
    %v382 = vmax.f32 %v317, %v282
    %v383 = vmax.f32 %v318, %v283
    %v384 = vmax.f32 %v319, %v284
    %v385 = vmax.f32 %v320, %v285
    %v386 = vmax.f32 %v250, %v299
    %v387 = vmax.f32 %v264, %v300
    %v388 = vmax.f32 %v251, %v301
    %v389 = vmax.f32 %v265, %v302
    %v390 = vmax.f32 %v382, %v386
    %v391 = vmax.f32 %v383, %v387
    %v392 = vmax.f32 %v384, %v388
    %v393 = vmax.f32 %v385, %v389
    %v394 = vmax.f32 %v390, %v334
    %v395 = vmax.f32 %v391, %v335
    %v396 = vmax.f32 %v392, %v336
    %v397 = vmax.f32 %v393, %v337
    %v398 = vadd.f32 %v378, %v394
    %v399 = vadd.f32 %v379, %v395
    %v400 = vadd.f32 %v380, %v396
    %v401 = vadd.f32 %v381, %v397
    %v402 = vld [vmem:[#allocation4] sm:$0xff]
    %v403 = vld [vmem:[#allocation4 + $0x8] sm:$0xff]
    %v404 = vld [vmem:[#allocation4 + $0x10] sm:$0xff]
    %v405 = vld [vmem:[#allocation4 + $0x18] sm:$0xff]
    %v406 = vld [vmem:[#allocation4 + $0x20] sm:$0xff]
    %v407 = vld [vmem:[#allocation4 + $0x28] sm:$0xff]
    %v408 = vld [vmem:[#allocation4 + $0x30] sm:$0xff]
    %v409 = vld [vmem:[#allocation4 + $0x38] sm:$0xff]
    %v410 = vld [vmem:[#allocation4 + $0x40] sm:$0xff]
    %v411 = vld [vmem:[#allocation4 + $0x48] sm:$0xff]
    %v412 = vld [vmem:[#allocation4 + $0x50] sm:$0xff]
    %v413 = vld [vmem:[#allocation4 + $0x58] sm:$0xff]
    %v414 = vld [vmem:[#allocation4 + $0x60] sm:$0xff]
    %v415 = vld [vmem:[#allocation4 + $0x68] sm:$0xff]
    %v416 = vld [vmem:[#allocation4 + $0x70] sm:$0xff]
    %v417 = vld [vmem:[#allocation4 + $0x78] sm:$0xff]
    %v418 = vld [vmem:[#allocation4 + $0x80] sm:$0xff]
    %v419 = vld [vmem:[#allocation4 + $0x88] sm:$0xff]
    %v420 = vld [vmem:[#allocation4 + $0x90] sm:$0xff]
    %v421 = vld [vmem:[#allocation4 + $0x98] sm:$0xff]
    %v422 = vld [vmem:[#allocation4 + $0xa0] sm:$0xff]
    %v423 = vld [vmem:[#allocation4 + $0xa8] sm:$0xff]
    %v424 = vld [vmem:[#allocation4 + $0xb0] sm:$0xff]
    %v425 = vld [vmem:[#allocation4 + $0xb8] sm:$0xff]
    %v426 = vld [vmem:[#allocation4 + $0xc0] sm:$0xff]
    %v427 = vld [vmem:[#allocation4 + $0xc8] sm:$0xff]
    %v428 = vld [vmem:[#allocation4 + $0xd0] sm:$0xff]
    %v429 = vld [vmem:[#allocation4 + $0xd8] sm:$0xff]
    %v430 = vld [vmem:[#allocation4 + $0xe0] sm:$0xff]
    %v431 = vld [vmem:[#allocation4 + $0xe8] sm:$0xff]
    %v432 = vld [vmem:[#allocation4 + $0xf0] sm:$0xff]
    %v433 = vld [vmem:[#allocation4 + $0xf8] sm:$0xff]
    %s434 = scalar_lea.vmem [#allocation4], 256
    %v435 = vld [vmem:[%s434] sm:$0xff]
    %v436 = vld [vmem:[%s434 + $0x8] sm:$0xff]
    %v437 = vld [vmem:[%s434 + $0x10] sm:$0xff]
    %v438 = vld [vmem:[%s434 + $0x18] sm:$0xff]
    %v439 = vld [vmem:[%s434 + $0x20] sm:$0xff]
    %v440 = vld [vmem:[%s434 + $0x28] sm:$0xff]
    %v441 = vld [vmem:[%s434 + $0x30] sm:$0xff]
    %v442 = vld [vmem:[%s434 + $0x38] sm:$0xff]
    %v443 = vld [vmem:[%s434 + $0x40] sm:$0xff]
    %v444 = vld [vmem:[%s434 + $0x48] sm:$0xff]
    %v445 = vld [vmem:[%s434 + $0x50] sm:$0xff]
    %v446 = vld [vmem:[%s434 + $0x58] sm:$0xff]
    %v447 = vld [vmem:[%s434 + $0x60] sm:$0xff]
    %v448 = vld [vmem:[%s434 + $0x68] sm:$0xff]
    %v449 = vld [vmem:[%s434 + $0x70] sm:$0xff]
    %v450 = vld [vmem:[%s434 + $0x78] sm:$0xff]
    %v451 = vld [vmem:[%s434 + $0x80] sm:$0xff]
    %v452 = vld [vmem:[%s434 + $0x88] sm:$0xff]
    %v453 = vld [vmem:[%s434 + $0x90] sm:$0xff]
    %v454 = vld [vmem:[%s434 + $0x98] sm:$0xff]
    %v455 = vld [vmem:[%s434 + $0xa0] sm:$0xff]
    %v456 = vld [vmem:[%s434 + $0xa8] sm:$0xff]
    %v457 = vld [vmem:[%s434 + $0xb0] sm:$0xff]
    %v458 = vld [vmem:[%s434 + $0xb8] sm:$0xff]
    %v459 = vld [vmem:[%s434 + $0xc0] sm:$0xff]
    %v460 = vld [vmem:[%s434 + $0xc8] sm:$0xff]
    %v461 = vld [vmem:[%s434 + $0xd0] sm:$0xff]
    %v462 = vld [vmem:[%s434 + $0xd8] sm:$0xff]
    %v463 = vld [vmem:[%s434 + $0xe0] sm:$0xff]
    %v464 = vld [vmem:[%s434 + $0xe8] sm:$0xff]
    %v465 = vld [vmem:[%s434 + $0xf0] sm:$0xff]
    %v466 = vld [vmem:[%s434 + $0xf8] sm:$0xff]
    %467 = vmatprep.subr.mxu0 0.0
    %468 = vmatpush1.msra.mxu0 %v435
    %469 = vmatprep.subr.mxu0 0.0
    %470 = vmatpush1.msra.mxu0 %v436
    %471 = vmatprep.subr.mxu0 0.0
    %472 = vmatpush1.msra.mxu0 %v437
    %473 = vmatprep.subr.mxu0 0.0
    %474 = vmatpush1.msra.mxu0 %v438
    %475 = vmatprep.subr.mxu0 0.0
    %476 = vmatpush1.msra.mxu0 %v439
    %477 = vmatprep.subr.mxu0 0.0
    %478 = vmatpush1.msra.mxu0 %v440
    %479 = vmatprep.subr.mxu0 0.0
    %480 = vmatpush1.msra.mxu0 %v441
    %481 = vmatprep.subr.mxu0 0.0
    %482 = vmatpush1.msra.mxu0 %v442
    %483 = vmatprep.subr.mxu0 0.0
    %484 = vmatpush1.msra.mxu0 %v443
    %485 = vmatprep.subr.mxu0 0.0
    %486 = vmatpush1.msra.mxu0 %v444
    %487 = vmatprep.subr.mxu0 0.0
    %488 = vmatpush1.msra.mxu0 %v445
    %489 = vmatprep.subr.mxu0 0.0
    %490 = vmatpush1.msra.mxu0 %v446
    %491 = vmatprep.subr.mxu0 0.0
    %492 = vmatpush1.msra.mxu0 %v447
    %493 = vmatprep.subr.mxu0 0.0
    %494 = vmatpush1.msra.mxu0 %v448
    %495 = vmatprep.subr.mxu0 0.0
    %496 = vmatpush1.msra.mxu0 %v449
    %497 = vmatprep.subr.mxu0 0.0
    %498 = vmatpush1.msra.mxu0 %v450
    %499 = vmatprep.subr.mxu0 0.0
    %500 = vmatpush1.msra.mxu0 %v451
    %501 = vmatprep.subr.mxu0 0.0
    %502 = vmatpush1.msra.mxu0 %v452
    %503 = vmatprep.subr.mxu0 0.0
    %504 = vmatpush1.msra.mxu0 %v453
    %505 = vmatprep.subr.mxu0 0.0
    %506 = vmatpush1.msra.mxu0 %v454
    %507 = vmatprep.subr.mxu0 0.0
    %508 = vmatpush1.msra.mxu0 %v455
    %509 = vmatprep.subr.mxu0 0.0
    %510 = vmatpush1.msra.mxu0 %v456
    %511 = vmatprep.subr.mxu0 0.0
    %512 = vmatpush1.msra.mxu0 %v457
    %513 = vmatprep.subr.mxu0 0.0
    %514 = vmatpush1.msra.mxu0 %v458
    %515 = vmatprep.subr.mxu0 0.0
    %516 = vmatpush1.msra.mxu0 %v459
    %517 = vmatprep.subr.mxu0 0.0
    %518 = vmatpush1.msra.mxu0 %v460
    %519 = vmatprep.subr.mxu0 0.0
    %520 = vmatpush1.msra.mxu0 %v461
    %521 = vmatprep.subr.mxu0 0.0
    %522 = vmatpush1.msra.mxu0 %v462
    %523 = vmatprep.subr.mxu0 0.0
    %524 = vmatpush1.msra.mxu0 %v463
    %525 = vmatprep.subr.mxu0 0.0
    %526 = vmatpush1.msra.mxu0 %v464
    %527 = vmatprep.subr.mxu0 0.0
    %528 = vmatpush1.msra.mxu0 %v465
    %529 = vmatprep.subr.mxu0 0.0
    %530 = vmatpush1.msra.mxu0 %v466
    %531 = vmatprep.mubr.f32.mxu0 %v264
    %532 = vmatmul.mubr.f32.gmra.mrb[0].mxu0 %v250
    %v533 = vpop.f32.mrb[0].mxu0
    %v534 = vadd.f32 0.0, %v533
    %v535 = vpop.f32.mrb[0].mxu0
    %536 = vmatprep.mubr.f32.mxu0 %v265
    %537 = vmatmul.mubr.f32.gmra.mrb[0].mxu0 %v251
    %v538 = vpop.f32.mrb[0].mxu0
    %v539 = vadd.f32 0.0, %v538
    %v540 = vpop.f32.mrb[0].mxu0
    %541 = vdwg.mxu0
    %542 = vmatprep.subr.mxu0 0.0
    %543 = vmatpush1.msra.mxu0 %v402
    %544 = vmatprep.subr.mxu0 0.0
    %545 = vmatpush1.msra.mxu0 %v403
    %546 = vmatprep.subr.mxu0 0.0
    %547 = vmatpush1.msra.mxu0 %v404
    %548 = vmatprep.subr.mxu0 0.0
    %549 = vmatpush1.msra.mxu0 %v405
    %550 = vmatprep.subr.mxu0 0.0
    %551 = vmatpush1.msra.mxu0 %v406
    %552 = vmatprep.subr.mxu0 0.0
    %553 = vmatpush1.msra.mxu0 %v407
    %554 = vmatprep.subr.mxu0 0.0
    %555 = vmatpush1.msra.mxu0 %v408
    %556 = vmatprep.subr.mxu0 0.0
    %557 = vmatpush1.msra.mxu0 %v409
    %558 = vmatprep.subr.mxu0 0.0
    %559 = vmatpush1.msra.mxu0 %v410
    %560 = vmatprep.subr.mxu0 0.0
    %561 = vmatpush1.msra.mxu0 %v411
    %562 = vmatprep.subr.mxu0 0.0
    %563 = vmatpush1.msra.mxu0 %v412
    %564 = vmatprep.subr.mxu0 0.0
    %565 = vmatpush1.msra.mxu0 %v413
    %566 = vmatprep.subr.mxu0 0.0
    %567 = vmatpush1.msra.mxu0 %v414
    %568 = vmatprep.subr.mxu0 0.0
    %569 = vmatpush1.msra.mxu0 %v415
    %570 = vmatprep.subr.mxu0 0.0
    %571 = vmatpush1.msra.mxu0 %v416
    %572 = vmatprep.subr.mxu0 0.0
    %573 = vmatpush1.msra.mxu0 %v417
    %574 = vmatprep.subr.mxu0 0.0
    %575 = vmatpush1.msra.mxu0 %v418
    %576 = vmatprep.subr.mxu0 0.0
    %577 = vmatpush1.msra.mxu0 %v419
    %578 = vmatprep.subr.mxu0 0.0
    %579 = vmatpush1.msra.mxu0 %v420
    %580 = vmatprep.subr.mxu0 0.0
    %581 = vmatpush1.msra.mxu0 %v421
    %582 = vmatprep.subr.mxu0 0.0
    %583 = vmatpush1.msra.mxu0 %v422
    %584 = vmatprep.subr.mxu0 0.0
    %585 = vmatpush1.msra.mxu0 %v423
    %586 = vmatprep.subr.mxu0 0.0
    %587 = vmatpush1.msra.mxu0 %v424
    %588 = vmatprep.subr.mxu0 0.0
    %589 = vmatpush1.msra.mxu0 %v425
    %590 = vmatprep.subr.mxu0 0.0
    %591 = vmatpush1.msra.mxu0 %v426
    %592 = vmatprep.subr.mxu0 0.0
    %593 = vmatpush1.msra.mxu0 %v427
    %594 = vmatprep.subr.mxu0 0.0
    %595 = vmatpush1.msra.mxu0 %v428
    %596 = vmatprep.subr.mxu0 0.0
    %597 = vmatpush1.msra.mxu0 %v429
    %598 = vmatprep.subr.mxu0 0.0
    %599 = vmatpush1.msra.mxu0 %v430
    %600 = vmatprep.subr.mxu0 0.0
    %601 = vmatpush1.msra.mxu0 %v431
    %602 = vmatprep.subr.mxu0 0.0
    %603 = vmatpush1.msra.mxu0 %v432
    %604 = vmatprep.subr.mxu0 0.0
    %605 = vmatpush1.msra.mxu0 %v433
    %606 = vmatprep.mubr.f32.mxu0 %v279
    %607 = vmatmul.mubr.f32.gmra.mrb[0].mxu0 %v278
    %v608 = vpop.f32.mrb[0].mxu0
    %v609 = vadd.f32 %v534, %v608
    %v610 = vpop.f32.mrb[0].mxu0
    %611 = vmatprep.mubr.f32.mxu0 %v281
    %612 = vmatmul.mubr.f32.gmra.mrb[0].mxu0 %v280
    %v613 = vpop.f32.mrb[0].mxu0
    %v614 = vadd.f32 %v539, %v613
    %v615 = vpop.f32.mrb[0].mxu0
    %616 = vdwg.mxu0
    %s617 = scalar_lea.vmem [#allocation4], 512
    %v618 = vld [vmem:[%s617] sm:$0xff]
    %v619 = vld [vmem:[%s617 + $0x8] sm:$0xff]
    %v620 = vld [vmem:[%s617 + $0x10] sm:$0xff]
    %v621 = vld [vmem:[%s617 + $0x18] sm:$0xff]
    %v622 = vld [vmem:[%s617 + $0x20] sm:$0xff]
    %v623 = vld [vmem:[%s617 + $0x28] sm:$0xff]
    %v624 = vld [vmem:[%s617 + $0x30] sm:$0xff]
    %v625 = vld [vmem:[%s617 + $0x38] sm:$0xff]
    %v626 = vld [vmem:[%s617 + $0x40] sm:$0xff]
    %v627 = vld [vmem:[%s617 + $0x48] sm:$0xff]
    %v628 = vld [vmem:[%s617 + $0x50] sm:$0xff]
    %v629 = vld [vmem:[%s617 + $0x58] sm:$0xff]
    %v630 = vld [vmem:[%s617 + $0x60] sm:$0xff]
    %v631 = vld [vmem:[%s617 + $0x68] sm:$0xff]
    %v632 = vld [vmem:[%s617 + $0x70] sm:$0xff]
    %v633 = vld [vmem:[%s617 + $0x78] sm:$0xff]
    %v634 = vld [vmem:[%s617 + $0x80] sm:$0xff]
    %v635 = vld [vmem:[%s617 + $0x88] sm:$0xff]
    %v636 = vld [vmem:[%s617 + $0x90] sm:$0xff]
    %v637 = vld [vmem:[%s617 + $0x98] sm:$0xff]
    %v638 = vld [vmem:[%s617 + $0xa0] sm:$0xff]
    %v639 = vld [vmem:[%s617 + $0xa8] sm:$0xff]
    %v640 = vld [vmem:[%s617 + $0xb0] sm:$0xff]
    %v641 = vld [vmem:[%s617 + $0xb8] sm:$0xff]
    %v642 = vld [vmem:[%s617 + $0xc0] sm:$0xff]
    %v643 = vld [vmem:[%s617 + $0xc8] sm:$0xff]
    %v644 = vld [vmem:[%s617 + $0xd0] sm:$0xff]
    %v645 = vld [vmem:[%s617 + $0xd8] sm:$0xff]
    %v646 = vld [vmem:[%s617 + $0xe0] sm:$0xff]
    %v647 = vld [vmem:[%s617 + $0xe8] sm:$0xff]
    %v648 = vld [vmem:[%s617 + $0xf0] sm:$0xff]
    %v649 = vld [vmem:[%s617 + $0xf8] sm:$0xff]
    %650 = vmatprep.subr.mxu0 0.0
    %651 = vmatpush1.msra.mxu0 %v618
    %652 = vmatprep.subr.mxu0 0.0
    %653 = vmatpush1.msra.mxu0 %v619
    %654 = vmatprep.subr.mxu0 0.0
    %655 = vmatpush1.msra.mxu0 %v620
    %656 = vmatprep.subr.mxu0 0.0
    %657 = vmatpush1.msra.mxu0 %v621
    %658 = vmatprep.subr.mxu0 0.0
    %659 = vmatpush1.msra.mxu0 %v622
    %660 = vmatprep.subr.mxu0 0.0
    %661 = vmatpush1.msra.mxu0 %v623
    %662 = vmatprep.subr.mxu0 0.0
    %663 = vmatpush1.msra.mxu0 %v624
    %664 = vmatprep.subr.mxu0 0.0
    %665 = vmatpush1.msra.mxu0 %v625
    %666 = vmatprep.subr.mxu0 0.0
    %667 = vmatpush1.msra.mxu0 %v626
    %668 = vmatprep.subr.mxu0 0.0
    %669 = vmatpush1.msra.mxu0 %v627
    %670 = vmatprep.subr.mxu0 0.0
    %671 = vmatpush1.msra.mxu0 %v628
    %672 = vmatprep.subr.mxu0 0.0
    %673 = vmatpush1.msra.mxu0 %v629
    %674 = vmatprep.subr.mxu0 0.0
    %675 = vmatpush1.msra.mxu0 %v630
    %676 = vmatprep.subr.mxu0 0.0
    %677 = vmatpush1.msra.mxu0 %v631
    %678 = vmatprep.subr.mxu0 0.0
    %679 = vmatpush1.msra.mxu0 %v632
    %680 = vmatprep.subr.mxu0 0.0
    %681 = vmatpush1.msra.mxu0 %v633
    %682 = vmatprep.subr.mxu0 0.0
    %683 = vmatpush1.msra.mxu0 %v634
    %684 = vmatprep.subr.mxu0 0.0
    %685 = vmatpush1.msra.mxu0 %v635
    %686 = vmatprep.subr.mxu0 0.0
    %687 = vmatpush1.msra.mxu0 %v636
    %688 = vmatprep.subr.mxu0 0.0
    %689 = vmatpush1.msra.mxu0 %v637
    %690 = vmatprep.subr.mxu0 0.0
    %691 = vmatpush1.msra.mxu0 %v638
    %692 = vmatprep.subr.mxu0 0.0
    %693 = vmatpush1.msra.mxu0 %v639
    %694 = vmatprep.subr.mxu0 0.0
    %695 = vmatpush1.msra.mxu0 %v640
    %696 = vmatprep.subr.mxu0 0.0
    %697 = vmatpush1.msra.mxu0 %v641
    %698 = vmatprep.subr.mxu0 0.0
    %699 = vmatpush1.msra.mxu0 %v642
    %700 = vmatprep.subr.mxu0 0.0
    %701 = vmatpush1.msra.mxu0 %v643
    %702 = vmatprep.subr.mxu0 0.0
    %703 = vmatpush1.msra.mxu0 %v644
    %704 = vmatprep.subr.mxu0 0.0
    %705 = vmatpush1.msra.mxu0 %v645
    %706 = vmatprep.subr.mxu0 0.0
    %707 = vmatpush1.msra.mxu0 %v646
    %708 = vmatprep.subr.mxu0 0.0
    %709 = vmatpush1.msra.mxu0 %v647
    %710 = vmatprep.subr.mxu0 0.0
    %711 = vmatpush1.msra.mxu0 %v648
    %712 = vmatprep.subr.mxu0 0.0
    %713 = vmatpush1.msra.mxu0 %v649
    %714 = vmatprep.mubr.f32.mxu0 %v296
    %715 = vmatmul.mubr.f32.gmra.mrb[0].mxu0 %v295
    %v716 = vpop.f32.mrb[0].mxu0
    %v717 = vadd.f32 0.0, %v716
    %v718 = vpop.f32.mrb[0].mxu0
    %719 = vmatprep.mubr.f32.mxu0 %v298
    %720 = vmatmul.mubr.f32.gmra.mrb[0].mxu0 %v297
    %v721 = vpop.f32.mrb[0].mxu0
    %v722 = vadd.f32 0.0, %v721
    %v723 = vpop.f32.mrb[0].mxu0
    %724 = vdwg.mxu0
    %v725 = vadd.f32 %v609, %v717
    %v726 = vadd.f32 %v614, %v722
    %vm727 = vcmp.gt.f32.partialorder %v725, 0.0
    %vm728 = vcmp.gt.f32.partialorder %v726, 0.0
    %v729 = vmul.f32 %v725, 0.01
    %v730 = vmul.f32 %v726, 0.01
    %v731 = vsel %vm727, %v725, %v729
    %v732 = vsel %vm728, %v726, %v730
    %v733 = vld [vmem:[#allocation6] sm:$0xff]
    %v734 = vld [vmem:[#allocation6 + $0x8] sm:$0xff]
    %v735 = vld [vmem:[#allocation6 + $0x10] sm:$0xff]
    %v736 = vld [vmem:[#allocation6 + $0x18] sm:$0xff]
    %v737 = vld [vmem:[#allocation6 + $0x20] sm:$0xff]
    %v738 = vld [vmem:[#allocation6 + $0x28] sm:$0xff]
    %v739 = vld [vmem:[#allocation6 + $0x30] sm:$0xff]
    %v740 = vld [vmem:[#allocation6 + $0x38] sm:$0xff]
    %v741 = vld [vmem:[#allocation6 + $0x40] sm:$0xff]
    %v742 = vld [vmem:[#allocation6 + $0x48] sm:$0xff]
    %v743 = vld [vmem:[#allocation6 + $0x50] sm:$0xff]
    %v744 = vld [vmem:[#allocation6 + $0x58] sm:$0xff]
    %v745 = vld [vmem:[#allocation6 + $0x60] sm:$0xff]
    %v746 = vld [vmem:[#allocation6 + $0x68] sm:$0xff]
    %v747 = vld [vmem:[#allocation6 + $0x70] sm:$0xff]
    %v748 = vld [vmem:[#allocation6 + $0x78] sm:$0xff]
    %v750 = vsel %vm240, %v731, 0
    %v753 = vsel %vm240, %v732, 0
    %755 = vmatprep.subr.mxu0 %v734
    %756 = vmatpush1.msra.mxu0 %v733
    %757 = vmatprep.subr.mxu0 %v736
    %758 = vmatpush1.msra.mxu0 %v735
    %759 = vmatprep.subr.mxu0 %v738
    %760 = vmatpush1.msra.mxu0 %v737
    %761 = vmatprep.subr.mxu0 %v740
    %762 = vmatpush1.msra.mxu0 %v739
    %763 = vmatprep.subr.mxu0 %v742
    %764 = vmatpush1.msra.mxu0 %v741
    %765 = vmatprep.subr.mxu0 %v744
    %766 = vmatpush1.msra.mxu0 %v743
    %767 = vmatprep.subr.mxu0 %v746
    %768 = vmatpush1.msra.mxu0 %v745
    %769 = vmatprep.subr.mxu0 %v748
    %770 = vmatpush1.msra.mxu0 %v747
    %771 = vmatprep.subr.mxu0 0.0
    %772 = vmatpush1.msra.mxu0 0.0
    %773 = vmatprep.subr.mxu0 0.0
    %774 = vmatpush1.msra.mxu0 0.0
    %775 = vmatprep.subr.mxu0 0.0
    %776 = vmatpush1.msra.mxu0 0.0
    %777 = vmatprep.subr.mxu0 0.0
    %778 = vmatpush1.msra.mxu0 0.0
    %779 = vmatprep.subr.mxu0 0.0
    %780 = vmatpush1.msra.mxu0 0.0
    %781 = vmatprep.subr.mxu0 0.0
    %782 = vmatpush1.msra.mxu0 0.0
    %783 = vmatprep.subr.mxu0 0.0
    %784 = vmatpush1.msra.mxu0 0.0
    %785 = vmatprep.subr.mxu0 0.0
    %786 = vmatpush1.msra.mxu0 0.0
    %787 = vmatprep.subr.mxu0 0.0
    %788 = vmatpush1.msra.mxu0 0.0
    %789 = vmatprep.subr.mxu0 0.0
    %790 = vmatpush1.msra.mxu0 0.0
    %791 = vmatprep.subr.mxu0 0.0
    %792 = vmatpush1.msra.mxu0 0.0
    %793 = vmatprep.subr.mxu0 0.0
    %794 = vmatpush1.msra.mxu0 0.0
    %795 = vmatprep.subr.mxu0 0.0
    %796 = vmatpush1.msra.mxu0 0.0
    %797 = vmatprep.subr.mxu0 0.0
    %798 = vmatpush1.msra.mxu0 0.0
    %799 = vmatprep.subr.mxu0 0.0
    %800 = vmatpush1.msra.mxu0 0.0
    %801 = vmatprep.subr.mxu0 0.0
    %802 = vmatpush1.msra.mxu0 0.0
    %803 = vmatprep.subr.mxu0 0.0
    %804 = vmatpush1.msra.mxu0 0.0
    %805 = vmatprep.subr.mxu0 0.0
    %806 = vmatpush1.msra.mxu0 0.0
    %807 = vmatprep.subr.mxu0 0.0
    %808 = vmatpush1.msra.mxu0 0.0
    %809 = vmatprep.subr.mxu0 0.0
    %810 = vmatpush1.msra.mxu0 0.0
    %811 = vmatprep.subr.mxu0 0.0
    %812 = vmatpush1.msra.mxu0 0.0
    %813 = vmatprep.subr.mxu0 0.0
    %814 = vmatpush1.msra.mxu0 0.0
    %815 = vmatprep.subr.mxu0 0.0
    %816 = vmatpush1.msra.mxu0 0.0
    %817 = vmatprep.subr.mxu0 0.0
    %818 = vmatpush1.msra.mxu0 0.0
    %819 = vmatprep.mubr.f32.mxu0 0.0
    %820 = vmatmul.mubr.f32.gmra.mrb[0].mxu0 %v750
    %v821 = vpop.f32.mrb[0].mxu0
    %v822 = vadd.f32 0.0, %v821
    %v823 = vpop.f32.mrb[0].mxu0
    %v824 = vadd.f32 0.0, %v823
    %825 = vmatprep.mubr.f32.mxu0 0.0
    %826 = vmatmul.mubr.f32.gmra.mrb[0].mxu0 %v753
    %v827 = vpop.f32.mrb[0].mxu0
    %v828 = vadd.f32 0.0, %v827
    %v829 = vpop.f32.mrb[0].mxu0
    %v830 = vadd.f32 0.0, %v829
    %831 = vdwg.mxu0
    %v832 = vsub.f32 0.0, %v822
    %v833 = vsub.f32 0.0, %v824
    %v834 = vsub.f32 0.0, %v828
    %v835 = vsub.f32 0.0, %v830
    %v836 = vmul.f32 %v832, 1.442695
    %v837 = vpow.pop %v836
    %v838 = vmul.f32 %v833, 1.442695
    %v839 = vpow.pop %v838
    %v840 = vmul.f32 %v834, 1.442695
    %v841 = vpow.pop %v840
    %v842 = vmul.f32 %v835, 1.442695
    %v843 = vpow.pop %v842
    %v844 = vadd.f32 %v837, 1.0
    %v845 = vadd.f32 %v839, 1.0
    %v846 = vadd.f32 %v841, 1.0
    %v847 = vadd.f32 %v843, 1.0
    %v848 = vrcp.pop %v844
    %v849 = vmul.f32 1.0, %v848
    %v850 = vrcp.pop %v845
    %v851 = vmul.f32 1.0, %v850
    %v852 = vrcp.pop %v846
    %v853 = vmul.f32 1.0, %v852
    %v854 = vrcp.pop %v847
    %v855 = vmul.f32 1.0, %v854
    %856 = vrot.lane.b32.xlu0 %v731, 64
    %v857 = vpop.permute.xlu0 %856
    %858 = vrot.lane.b32.xlu0 %v732, 64
    %v859 = vpop.permute.xlu0 %858
    %v862 = vrot.slane %v857, 7
    %v863 = vrot.slane %v859, 7
    %v864 = vsel %vm272, %v862, %v863
    %v865 = vsel %vm272, %v863, %v862
    %v866 = vsel %vm277, %v865, 0.0
    %v867 = vsel %vm277, %v864, 0.0
    %v868 = vrot.slane %v857, 1
    %v869 = vrot.slane %v859, 1
    %v870 = vsel %vm290, %v868, %v869
    %v871 = vsel %vm290, %v869, %v868
    %v872 = vsel %vm290, %v870, 0.0
    %v873 = vsel %vm290, %v871, 0.0
    %v874 = vld [vmem:[#allocation7] sm:$0xff]
    %v875 = vld [vmem:[#allocation7 + $0x8] sm:$0xff]
    %v876 = vld [vmem:[#allocation7 + $0x10] sm:$0xff]
    %v877 = vld [vmem:[#allocation7 + $0x18] sm:$0xff]
    %v878 = vld [vmem:[#allocation7 + $0x20] sm:$0xff]
    %v879 = vld [vmem:[#allocation7 + $0x28] sm:$0xff]
    %v880 = vld [vmem:[#allocation7 + $0x30] sm:$0xff]
    %v881 = vld [vmem:[#allocation7 + $0x38] sm:$0xff]
    %v882 = vld [vmem:[#allocation7 + $0x40] sm:$0xff]
    %v883 = vld [vmem:[#allocation7 + $0x48] sm:$0xff]
    %v884 = vld [vmem:[#allocation7 + $0x50] sm:$0xff]
    %v885 = vld [vmem:[#allocation7 + $0x58] sm:$0xff]
    %v886 = vld [vmem:[#allocation7 + $0x60] sm:$0xff]
    %v887 = vld [vmem:[#allocation7 + $0x68] sm:$0xff]
    %v888 = vld [vmem:[#allocation7 + $0x70] sm:$0xff]
    %v889 = vld [vmem:[#allocation7 + $0x78] sm:$0xff]
    %s890 = scalar_lea.vmem [#allocation7], 128
    %v891 = vld [vmem:[%s890] sm:$0xff]
    %v892 = vld [vmem:[%s890 + $0x8] sm:$0xff]
    %v893 = vld [vmem:[%s890 + $0x10] sm:$0xff]
    %v894 = vld [vmem:[%s890 + $0x18] sm:$0xff]
    %v895 = vld [vmem:[%s890 + $0x20] sm:$0xff]
    %v896 = vld [vmem:[%s890 + $0x28] sm:$0xff]
    %v897 = vld [vmem:[%s890 + $0x30] sm:$0xff]
    %v898 = vld [vmem:[%s890 + $0x38] sm:$0xff]
    %v899 = vld [vmem:[%s890 + $0x40] sm:$0xff]
    %v900 = vld [vmem:[%s890 + $0x48] sm:$0xff]
    %v901 = vld [vmem:[%s890 + $0x50] sm:$0xff]
    %v902 = vld [vmem:[%s890 + $0x58] sm:$0xff]
    %v903 = vld [vmem:[%s890 + $0x60] sm:$0xff]
    %v904 = vld [vmem:[%s890 + $0x68] sm:$0xff]
    %v905 = vld [vmem:[%s890 + $0x70] sm:$0xff]
    %v906 = vld [vmem:[%s890 + $0x78] sm:$0xff]
    %v907 = vsel %vm240, %v857, 0
    %v909 = vsel %vm240, %v859, 0
    %911 = vmatprep.subr.mxu0 %v892
    %912 = vmatpush1.msra.mxu0 %v891
    %913 = vmatprep.subr.mxu0 %v894
    %914 = vmatpush1.msra.mxu0 %v893
    %915 = vmatprep.subr.mxu0 %v896
    %916 = vmatpush1.msra.mxu0 %v895
    %917 = vmatprep.subr.mxu0 %v898
    %918 = vmatpush1.msra.mxu0 %v897
    %919 = vmatprep.subr.mxu0 %v900
    %920 = vmatpush1.msra.mxu0 %v899
    %921 = vmatprep.subr.mxu0 %v902
    %922 = vmatpush1.msra.mxu0 %v901
    %923 = vmatprep.subr.mxu0 %v904
    %924 = vmatpush1.msra.mxu0 %v903
    %925 = vmatprep.subr.mxu0 %v906
    %926 = vmatpush1.msra.mxu0 %v905
    %927 = vmatprep.subr.mxu0 0.0
    %928 = vmatpush1.msra.mxu0 0.0
    %929 = vmatprep.subr.mxu0 0.0
    %930 = vmatpush1.msra.mxu0 0.0
    %931 = vmatprep.subr.mxu0 0.0
    %932 = vmatpush1.msra.mxu0 0.0
    %933 = vmatprep.subr.mxu0 0.0
    %934 = vmatpush1.msra.mxu0 0.0
    %935 = vmatprep.subr.mxu0 0.0
    %936 = vmatpush1.msra.mxu0 0.0
    %937 = vmatprep.subr.mxu0 0.0
    %938 = vmatpush1.msra.mxu0 0.0
    %939 = vmatprep.subr.mxu0 0.0
    %940 = vmatpush1.msra.mxu0 0.0
    %941 = vmatprep.subr.mxu0 0.0
    %942 = vmatpush1.msra.mxu0 0.0
    %943 = vmatprep.subr.mxu0 0.0
    %944 = vmatpush1.msra.mxu0 0.0
    %945 = vmatprep.subr.mxu0 0.0
    %946 = vmatpush1.msra.mxu0 0.0
    %947 = vmatprep.subr.mxu0 0.0
    %948 = vmatpush1.msra.mxu0 0.0
    %949 = vmatprep.subr.mxu0 0.0
    %950 = vmatpush1.msra.mxu0 0.0
    %951 = vmatprep.subr.mxu0 0.0
    %952 = vmatpush1.msra.mxu0 0.0
    %953 = vmatprep.subr.mxu0 0.0
    %954 = vmatpush1.msra.mxu0 0.0
    %955 = vmatprep.subr.mxu0 0.0
    %956 = vmatpush1.msra.mxu0 0.0
    %957 = vmatprep.subr.mxu0 0.0
    %958 = vmatpush1.msra.mxu0 0.0
    %959 = vmatprep.subr.mxu0 0.0
    %960 = vmatpush1.msra.mxu0 0.0
    %961 = vmatprep.subr.mxu0 0.0
    %962 = vmatpush1.msra.mxu0 0.0
    %963 = vmatprep.subr.mxu0 0.0
    %964 = vmatpush1.msra.mxu0 0.0
    %965 = vmatprep.subr.mxu0 0.0
    %966 = vmatpush1.msra.mxu0 0.0
    %967 = vmatprep.subr.mxu0 0.0
    %968 = vmatpush1.msra.mxu0 0.0
    %969 = vmatprep.subr.mxu0 0.0
    %970 = vmatpush1.msra.mxu0 0.0
    %971 = vmatprep.subr.mxu0 0.0
    %972 = vmatpush1.msra.mxu0 0.0
    %973 = vmatprep.subr.mxu0 0.0
    %974 = vmatpush1.msra.mxu0 0.0
    %975 = vmatprep.mubr.f32.mxu0 0.0
    %976 = vmatmul.mubr.f32.gmra.mrb[0].mxu0 %v907
    %v977 = vpop.f32.mrb[0].mxu0
    %v978 = vadd.f32 0.0, %v977
    %v979 = vpop.f32.mrb[0].mxu0
    %v980 = vadd.f32 0.0, %v979
    %981 = vmatprep.mubr.f32.mxu0 0.0
    %982 = vmatmul.mubr.f32.gmra.mrb[0].mxu0 %v909
    %v983 = vpop.f32.mrb[0].mxu0
    %v984 = vadd.f32 0.0, %v983
    %v985 = vpop.f32.mrb[0].mxu0
    %v986 = vadd.f32 0.0, %v985
    %987 = vdwg.mxu0
    %v989 = vsel %vm240, %v866, 0
    %v992 = vsel %vm240, %v867, 0
    %994 = vmatprep.subr.mxu0 %v875
    %995 = vmatpush1.msra.mxu0 %v874
    %996 = vmatprep.subr.mxu0 %v877
    %997 = vmatpush1.msra.mxu0 %v876
    %998 = vmatprep.subr.mxu0 %v879
    %999 = vmatpush1.msra.mxu0 %v878
    %1000 = vmatprep.subr.mxu0 %v881
    %1001 = vmatpush1.msra.mxu0 %v880
    %1002 = vmatprep.subr.mxu0 %v883
    %1003 = vmatpush1.msra.mxu0 %v882
    %1004 = vmatprep.subr.mxu0 %v885
    %1005 = vmatpush1.msra.mxu0 %v884
    %1006 = vmatprep.subr.mxu0 %v887
    %1007 = vmatpush1.msra.mxu0 %v886
    %1008 = vmatprep.subr.mxu0 %v889
    %1009 = vmatpush1.msra.mxu0 %v888
    %1010 = vmatprep.subr.mxu0 0.0
    %1011 = vmatpush1.msra.mxu0 0.0
    %1012 = vmatprep.subr.mxu0 0.0
    %1013 = vmatpush1.msra.mxu0 0.0
    %1014 = vmatprep.subr.mxu0 0.0
    %1015 = vmatpush1.msra.mxu0 0.0
    %1016 = vmatprep.subr.mxu0 0.0
    %1017 = vmatpush1.msra.mxu0 0.0
    %1018 = vmatprep.subr.mxu0 0.0
    %1019 = vmatpush1.msra.mxu0 0.0
    %1020 = vmatprep.subr.mxu0 0.0
    %1021 = vmatpush1.msra.mxu0 0.0
    %1022 = vmatprep.subr.mxu0 0.0
    %1023 = vmatpush1.msra.mxu0 0.0
    %1024 = vmatprep.subr.mxu0 0.0
    %1025 = vmatpush1.msra.mxu0 0.0
    %1026 = vmatprep.subr.mxu0 0.0
    %1027 = vmatpush1.msra.mxu0 0.0
    %1028 = vmatprep.subr.mxu0 0.0
    %1029 = vmatpush1.msra.mxu0 0.0
    %1030 = vmatprep.subr.mxu0 0.0
    %1031 = vmatpush1.msra.mxu0 0.0
    %1032 = vmatprep.subr.mxu0 0.0
    %1033 = vmatpush1.msra.mxu0 0.0
    %1034 = vmatprep.subr.mxu0 0.0
    %1035 = vmatpush1.msra.mxu0 0.0
    %1036 = vmatprep.subr.mxu0 0.0
    %1037 = vmatpush1.msra.mxu0 0.0
    %1038 = vmatprep.subr.mxu0 0.0
    %1039 = vmatpush1.msra.mxu0 0.0
    %1040 = vmatprep.subr.mxu0 0.0
    %1041 = vmatpush1.msra.mxu0 0.0
    %1042 = vmatprep.subr.mxu0 0.0
    %1043 = vmatpush1.msra.mxu0 0.0
    %1044 = vmatprep.subr.mxu0 0.0
    %1045 = vmatpush1.msra.mxu0 0.0
    %1046 = vmatprep.subr.mxu0 0.0
    %1047 = vmatpush1.msra.mxu0 0.0
    %1048 = vmatprep.subr.mxu0 0.0
    %1049 = vmatpush1.msra.mxu0 0.0
    %1050 = vmatprep.subr.mxu0 0.0
    %1051 = vmatpush1.msra.mxu0 0.0
    %1052 = vmatprep.subr.mxu0 0.0
    %1053 = vmatpush1.msra.mxu0 0.0
    %1054 = vmatprep.subr.mxu0 0.0
    %1055 = vmatpush1.msra.mxu0 0.0
    %1056 = vmatprep.subr.mxu0 0.0
    %1057 = vmatpush1.msra.mxu0 0.0
    %1058 = vmatprep.mubr.f32.mxu0 0.0
    %1059 = vmatmul.mubr.f32.gmra.mrb[0].mxu0 %v989
    %v1060 = vpop.f32.mrb[0].mxu0
    %v1061 = vadd.f32 %v978, %v1060
    %v1062 = vpop.f32.mrb[0].mxu0
    %v1063 = vadd.f32 %v980, %v1062
    %1064 = vmatprep.mubr.f32.mxu0 0.0
    %1065 = vmatmul.mubr.f32.gmra.mrb[0].mxu0 %v992
    %v1066 = vpop.f32.mrb[0].mxu0
    %v1067 = vadd.f32 %v984, %v1066
    %v1068 = vpop.f32.mrb[0].mxu0
    %v1069 = vadd.f32 %v986, %v1068
    %1070 = vdwg.mxu0
    %s1071 = scalar_lea.vmem [#allocation7], 256
    %v1072 = vld [vmem:[%s1071] sm:$0xff]
    %v1073 = vld [vmem:[%s1071 + $0x8] sm:$0xff]
    %v1074 = vld [vmem:[%s1071 + $0x10] sm:$0xff]
    %v1075 = vld [vmem:[%s1071 + $0x18] sm:$0xff]
    %v1076 = vld [vmem:[%s1071 + $0x20] sm:$0xff]
    %v1077 = vld [vmem:[%s1071 + $0x28] sm:$0xff]
    %v1078 = vld [vmem:[%s1071 + $0x30] sm:$0xff]
    %v1079 = vld [vmem:[%s1071 + $0x38] sm:$0xff]
    %v1080 = vld [vmem:[%s1071 + $0x40] sm:$0xff]
    %v1081 = vld [vmem:[%s1071 + $0x48] sm:$0xff]
    %v1082 = vld [vmem:[%s1071 + $0x50] sm:$0xff]
    %v1083 = vld [vmem:[%s1071 + $0x58] sm:$0xff]
    %v1084 = vld [vmem:[%s1071 + $0x60] sm:$0xff]
    %v1085 = vld [vmem:[%s1071 + $0x68] sm:$0xff]
    %v1086 = vld [vmem:[%s1071 + $0x70] sm:$0xff]
    %v1087 = vld [vmem:[%s1071 + $0x78] sm:$0xff]
    %v1089 = vsel %vm240, %v872, 0
    %v1092 = vsel %vm240, %v873, 0
    %1094 = vmatprep.subr.mxu0 %v1073
    %1095 = vmatpush1.msra.mxu0 %v1072
    %1096 = vmatprep.subr.mxu0 %v1075
    %1097 = vmatpush1.msra.mxu0 %v1074
    %1098 = vmatprep.subr.mxu0 %v1077
    %1099 = vmatpush1.msra.mxu0 %v1076
    %1100 = vmatprep.subr.mxu0 %v1079
    %1101 = vmatpush1.msra.mxu0 %v1078
    %1102 = vmatprep.subr.mxu0 %v1081
    %1103 = vmatpush1.msra.mxu0 %v1080
    %1104 = vmatprep.subr.mxu0 %v1083
    %1105 = vmatpush1.msra.mxu0 %v1082
    %1106 = vmatprep.subr.mxu0 %v1085
    %1107 = vmatpush1.msra.mxu0 %v1084
    %1108 = vmatprep.subr.mxu0 %v1087
    %1109 = vmatpush1.msra.mxu0 %v1086
    %1110 = vmatprep.subr.mxu0 0.0
    %1111 = vmatpush1.msra.mxu0 0.0
    %1112 = vmatprep.subr.mxu0 0.0
    %1113 = vmatpush1.msra.mxu0 0.0
    %1114 = vmatprep.subr.mxu0 0.0
    %1115 = vmatpush1.msra.mxu0 0.0
    %1116 = vmatprep.subr.mxu0 0.0
    %1117 = vmatpush1.msra.mxu0 0.0
    %1118 = vmatprep.subr.mxu0 0.0
    %1119 = vmatpush1.msra.mxu0 0.0
    %1120 = vmatprep.subr.mxu0 0.0
    %1121 = vmatpush1.msra.mxu0 0.0
    %1122 = vmatprep.subr.mxu0 0.0
    %1123 = vmatpush1.msra.mxu0 0.0
    %1124 = vmatprep.subr.mxu0 0.0
    %1125 = vmatpush1.msra.mxu0 0.0
    %1126 = vmatprep.subr.mxu0 0.0
    %1127 = vmatpush1.msra.mxu0 0.0
    %1128 = vmatprep.subr.mxu0 0.0
    %1129 = vmatpush1.msra.mxu0 0.0
    %1130 = vmatprep.subr.mxu0 0.0
    %1131 = vmatpush1.msra.mxu0 0.0
    %1132 = vmatprep.subr.mxu0 0.0
    %1133 = vmatpush1.msra.mxu0 0.0
    %1134 = vmatprep.subr.mxu0 0.0
    %1135 = vmatpush1.msra.mxu0 0.0
    %1136 = vmatprep.subr.mxu0 0.0
    %1137 = vmatpush1.msra.mxu0 0.0
    %1138 = vmatprep.subr.mxu0 0.0
    %1139 = vmatpush1.msra.mxu0 0.0
    %1140 = vmatprep.subr.mxu0 0.0
    %1141 = vmatpush1.msra.mxu0 0.0
    %1142 = vmatprep.subr.mxu0 0.0
    %1143 = vmatpush1.msra.mxu0 0.0
    %1144 = vmatprep.subr.mxu0 0.0
    %1145 = vmatpush1.msra.mxu0 0.0
    %1146 = vmatprep.subr.mxu0 0.0
    %1147 = vmatpush1.msra.mxu0 0.0
    %1148 = vmatprep.subr.mxu0 0.0
    %1149 = vmatpush1.msra.mxu0 0.0
    %1150 = vmatprep.subr.mxu0 0.0
    %1151 = vmatpush1.msra.mxu0 0.0
    %1152 = vmatprep.subr.mxu0 0.0
    %1153 = vmatpush1.msra.mxu0 0.0
    %1154 = vmatprep.subr.mxu0 0.0
    %1155 = vmatpush1.msra.mxu0 0.0
    %1156 = vmatprep.subr.mxu0 0.0
    %1157 = vmatpush1.msra.mxu0 0.0
    %1158 = vmatprep.mubr.f32.mxu0 0.0
    %1159 = vmatmul.mubr.f32.gmra.mrb[0].mxu0 %v1089
    %v1160 = vpop.f32.mrb[0].mxu0
    %v1161 = vadd.f32 0.0, %v1160
    %v1162 = vpop.f32.mrb[0].mxu0
    %v1163 = vadd.f32 0.0, %v1162
    %1164 = vmatprep.mubr.f32.mxu0 0.0
    %1165 = vmatmul.mubr.f32.gmra.mrb[0].mxu0 %v1092
    %v1166 = vpop.f32.mrb[0].mxu0
    %v1167 = vadd.f32 0.0, %v1166
    %v1168 = vpop.f32.mrb[0].mxu0
    %v1169 = vadd.f32 0.0, %v1168
    %1170 = vdwg.mxu0
    %v1171 = vadd.f32 %v1061, %v1161
    %v1172 = vadd.f32 %v1063, %v1163
    %v1173 = vadd.f32 %v1067, %v1167
    %v1174 = vadd.f32 %v1069, %v1169
    %v1175 = vsub.f32 0.0, %v1171
    %v1176 = vsub.f32 0.0, %v1172
    %v1177 = vsub.f32 0.0, %v1173
    %v1178 = vsub.f32 0.0, %v1174
    %v1179 = vmul.f32 %v1175, 1.442695
    %v1180 = vpow.pop %v1179
    %v1181 = vmul.f32 %v1176, 1.442695
    %v1182 = vpow.pop %v1181
    %v1183 = vmul.f32 %v1177, 1.442695
    %v1184 = vpow.pop %v1183
    %v1185 = vmul.f32 %v1178, 1.442695
    %v1186 = vpow.pop %v1185
    %v1187 = vadd.f32 %v1180, 1.0
    %v1188 = vadd.f32 %v1182, 1.0
    %v1189 = vadd.f32 %v1184, 1.0
    %v1190 = vadd.f32 %v1186, 1.0
    %v1191 = vrcp.pop %v1187
    %v1192 = vmul.f32 1.0, %v1191
    %v1193 = vrcp.pop %v1188
    %v1194 = vmul.f32 1.0, %v1193
    %v1195 = vrcp.pop %v1189
    %v1196 = vmul.f32 1.0, %v1195
    %v1197 = vrcp.pop %v1190
    %v1198 = vmul.f32 1.0, %v1197
    %v1199 = vmul.f32 %v358, %v849
    %v1200 = vmul.f32 %v359, %v851
    %v1201 = vmul.f32 %v360, %v853
    %v1202 = vmul.f32 %v361, %v855
    %v1203 = vmul.f32 %v398, %v1192
    %v1204 = vmul.f32 %v399, %v1194
    %v1205 = vmul.f32 %v400, %v1196
    %v1206 = vmul.f32 %v401, %v1198
    %v1207 = vadd.f32 %v1199, %v1203
    %v1208 = vadd.f32 %v1200, %v1204
    %v1209 = vadd.f32 %v1201, %v1205
    %v1210 = vadd.f32 %v1202, %v1206
    %v1211 = vrot.slane %v1207, 4
    %v1212 = vmax.f32 %v1207, %v1211
    %v1213 = vrot.slane %v1212, 2
    %v1214 = vmax.f32 %v1212, %v1213
    %v1215 = vrot.slane %v1214, 1
    %v1216 = vmax.f32 %v1214, %v1215
    %v1217 = vrot.slane %v1208, 4
    %v1218 = vmax.f32 %v1208, %v1217
    %v1219 = vrot.slane %v1218, 2
    %v1220 = vmax.f32 %v1218, %v1219
    %v1221 = vrot.slane %v1220, 1
    %v1222 = vmax.f32 %v1220, %v1221
    %v1223 = vrot.slane %v1209, 4
    %v1224 = vmax.f32 %v1209, %v1223
    %v1225 = vrot.slane %v1224, 2
    %v1226 = vmax.f32 %v1224, %v1225
    %v1227 = vrot.slane %v1226, 1
    %v1228 = vmax.f32 %v1226, %v1227
    %v1229 = vrot.slane %v1210, 4
    %v1230 = vmax.f32 %v1210, %v1229
    %v1231 = vrot.slane %v1230, 2
    %v1232 = vmax.f32 %v1230, %v1231
    %v1233 = vrot.slane %v1232, 1
    %v1234 = vmax.f32 %v1232, %v1233
    %v1239 = vcombine.low %v1216, %v1222
    %v1241 = vunpack.c.l.s4 1983009808
    %v1242 = vunpack.c.0.s8 %v1241
    %v1243 = vlaneseq
    %v1244 = vshrl.u32 %v1243, 7
    %v1245 = vsub.s32 %v1242, %v1244
    %v1246 = vrot.slane %v1239, %v1245
    %v1247 = vcombine.low %v1228, %v1234
    %v1249 = vunpack.c.l.s4 1983009808
    %v1250 = vunpack.c.0.s8 %v1249
    %v1251 = vlaneseq
    %v1252 = vshrl.u32 %v1251, 7
    %v1253 = vsub.s32 %v1250, %v1252
    %v1254 = vrot.slane %v1247, %v1253
    %vm1255 = vcmask 1044484
    %v1256 = vsel %vm1255, %v1246, %v1246
    %vm1257 = vcmask 1046534
    %v1258 = vsel %vm1257, %v1246, %v1256
    %v1259 = vrot.slane %v1254, 7
    %vm1260 = vcmask 1041409
    %v1261 = vsel %vm1260, %v1259, %v1258
    %vm1262 = vcmask 1043459
    %v1263 = vsel %vm1262, %v1259, %v1261
    %vm1264 = vcmask 1045509
    %v1265 = vsel %vm1264, %v1259, %v1263
    %vm1266 = vcmask 1047559
    %v1267 = vsel %vm1266, %v1259, %v1265
    %1269 = vst [vmem:[%s4] sm:$0xf] %v1267
    // Predicated region
    $region34: #{temporal_feature_aggregator.1} parent=1 // pred_check
      _
    $region35: #{temporal_feature_aggregator.1} parent=1 // pred_check_branch
      %1271 = sbr.rel (0) target = $region37
    $region36: #{temporal_feature_aggregator.1} parent=1 // pred_region
      _
    $region37: #{temporal_feature_aggregator.1} parent=1 // pred_fallthru
      _
    // Predicated region
    $region38: #{temporal_feature_aggregator.1} parent=1 // pred_check
      _
    $region39: #{temporal_feature_aggregator.1} parent=1 // pred_check_branch
      %1273 = sbr.rel (0) target = $region41
    $region40: #{temporal_feature_aggregator.1} parent=1 // pred_region
      _
    $region41: #{temporal_feature_aggregator.1} parent=1 // pred_fallthru
      _
    %1274 = vsyncpa [#allocation3], 1
    %1275 = vsyncpa [#allocation5], 1
    %1276 = vsyncpa [#allocation8], 1

</llo_original>
